<compile_context>
chip_gen: v7x
topology: tpu7x:2x2x1
jax: 0.10.0
libtpu: 0.0.40
codegen_flags: <defaults>
</compile_context>

<pallas_src>
import jax
import jax.numpy as jnp
from jax.experimental import pallas as pl
from jax.experimental.pallas import tpu as pltpu

PADL = 16  # left pad of the W axis in the conv1-output scratch (bf16 tile aligned)


def recog_kernel(x_ref, m1_ref, b1_ref, m2_ref, b2_ref, wl_ref, bl_ref,
                 o_ref, h1pad_ref):
    # x_ref:     (TILE_N, W+2, H*Cin)   bf16, W zero-padded by 1, lanes = h*Cin+ci
    # m1_ref:    (3, H*Cin, H*Cout)     bf16 block-banded conv1 weights (per kx)
    # b1_ref:    (1, H*Cout)            f32  bias tiled over h
    # m2_ref:    (3, H*Cout, H*Cout)    bf16 block-banded conv2 weights (per kx)
    # b2_ref:    (1, H*Cout)            f32
    # wl_ref:    (H*Cout, A_pad)        bf16 linear weight, lanes padded to 128
    # bl_ref:    (1, A_pad)             f32
    # o_ref:     (TILE_N*W, A_pad)      f32
    # h1pad_ref: (TILE_N, PADL+W+1, H*Cout) bf16 scratch (W-padded conv1 output)
    tile_n, wp2, hc_in = x_ref.shape
    W = wp2 - 2
    hc_mid = m1_ref.shape[-1]
    rows = tile_n * W

    # Only the two padding columns that conv2 ever reads need to be zero; the
    # interior is fully overwritten below (no full-scratch memset).
    h1pad_ref[:, PADL - 1:PADL, :] = jnp.zeros((tile_n, 1, hc_mid),
                                               h1pad_ref.dtype)
    h1pad_ref[:, PADL + W:PADL + W + 1, :] = jnp.zeros((tile_n, 1, hc_mid),
                                                       h1pad_ref.dtype)

    # ---- conv1: 3 matmuls (one per kx); ky + channel contraction fused ----
    acc1 = jnp.zeros((rows, hc_mid), jnp.float32)
    for kx in range(3):
        a = x_ref[:, kx:kx + W, :].reshape(rows, hc_in)
        acc1 = acc1 + jnp.dot(a, m1_ref[kx],
                              preferred_element_type=jnp.float32)
    h1 = jnp.maximum(acc1 + b1_ref[...], 0.0)                  # f32 VPU math

    # store conv1 activations (bf16) into the W-padded scratch, tile-aligned
    h1pad_ref[:, PADL:PADL + W, :] = (
        h1.reshape(tile_n, W, hc_mid).astype(h1pad_ref.dtype))

    # ---- conv2: 3 matmuls with K = H*Cout = 256 ----------------------------
    acc2 = jnp.zeros((rows, hc_mid), jnp.float32)
    for kx in range(3):
        a = h1pad_ref[:, PADL - 1 + kx:PADL - 1 + kx + W, :].reshape(rows,
                                                                     hc_mid)
        acc2 = acc2 + jnp.dot(a, m2_ref[kx],
                              preferred_element_type=jnp.float32)
    h2 = jnp.maximum(acc2 + b2_ref[...], 0.0)                  # (rows, H*Cout)

    # ---- fused Linear: one (rows, H*Cout) @ (H*Cout, A_pad) matmul ---------
    out = jnp.dot(h2.astype(wl_ref.dtype), wl_ref[...],
                  preferred_element_type=jnp.float32) + bl_ref[...]
    o_ref[...] = out.astype(o_ref.dtype)


def _banded_conv_weight(w, H):
    """(Cout, Cin, 3, 3) -> (3, H*Cin, H*Cout) block-banded weights.

    m[kx, hi*Cin + ci, ho*Cout + co] = w[co, ci, hi-ho+1, kx] if |hi-ho|<=1
    else 0 — the band structure implements the ky taps AND the h-direction
    zero padding of the 3x3 'same' convolution in a single matmul.
    """
    Cout, Cin = w.shape[0], w.shape[1]
    wt = jnp.transpose(w, (2, 3, 1, 0))                 # (ky, kx, Cin, Cout)
    hi = jnp.arange(H)[:, None]
    ho = jnp.arange(H)[None, :]
    ky = hi - ho + 1                                    # (H, H)
    valid = (ky >= 0) & (ky <= 2)
    band = wt[jnp.clip(ky, 0, 2)]                       # (H, H, 3, Cin, Cout)
    band = jnp.where(valid[:, :, None, None, None], band, 0.0)
    m = jnp.transpose(band, (2, 0, 3, 1, 4))            # (kx, hi, Cin, ho, Cout)
    return m.reshape(3, H * Cin, H * Cout)


def recognition_forward(x_nchw, params, *, compute_dtype=jnp.bfloat16):
    """x_nchw: (N, Cin, H, W) float32, PyTorch NCHW convention."""
    w1, b1, w2, b2, wl, bl = params
    N, Cin, H, W = x_nchw.shape
    Cout = w1.shape[0]                       # conv weight (Cout, Cin, 3, 3)
    A = wl.shape[0]                          # linear weight (A, Cout*H)
    A_pad = ((A + 127) // 128) * 128         # lane-dense output (feedback #8)
    HC_in, HC_mid = H * Cin, H * Cout

    # fold as much of the batch as possible into one grid step (feedback #1)
    tile_n = next(t for t in (16, 8, 4, 2, 1) if N % t == 0)
    tile_n = min(tile_n, N)
    rows = tile_n * W

    # activations -> (N, W+2, H*Cin), lanes = h*Cin + ci, W zero-padded by 1
    xt = jnp.transpose(x_nchw, (0, 3, 2, 1)).reshape(N, W, HC_in)
    x_in = jnp.pad(xt, ((0, 0), (1, 1), (0, 0))).astype(compute_dtype)

    m1 = _banded_conv_weight(w1, H).astype(compute_dtype)   # (3, HC_in, HC_mid)
    m2 = _banded_conv_weight(w2, H).astype(compute_dtype)   # (3, HC_mid, HC_mid)
    b1r = jnp.tile(b1, H).reshape(1, HC_mid).astype(jnp.float32)
    b2r = jnp.tile(b2, H).reshape(1, HC_mid).astype(jnp.float32)
    # linear weight (A, Cout*H) -> (H*Cout, A_pad): wlr[h*Cout+c, a] = wl[a, c*H+h]
    wlr = jnp.transpose(wl.reshape(A, Cout, H), (2, 1, 0)).reshape(HC_mid, A)
    wlr = jnp.pad(wlr, ((0, 0), (0, A_pad - A))).astype(compute_dtype)
    blr = jnp.pad(bl, (0, A_pad - A)).reshape(1, A_pad).astype(jnp.float32)

    out = pl.pallas_call(
        recog_kernel,
        out_shape=jax.ShapeDtypeStruct((N * W, A_pad), jnp.float32),
        grid_spec=pltpu.PrefetchScalarGridSpec(
            num_scalar_prefetch=0,
            grid=(N // tile_n,),
            in_specs=[
                pl.BlockSpec((tile_n, W + 2, HC_in), lambda i: (i, 0, 0)),
                pl.BlockSpec((3, HC_in, HC_mid), lambda i: (0, 0, 0)),
                pl.BlockSpec((1, HC_mid), lambda i: (0, 0)),
                pl.BlockSpec((3, HC_mid, HC_mid), lambda i: (0, 0, 0)),
                pl.BlockSpec((1, HC_mid), lambda i: (0, 0)),
                pl.BlockSpec((HC_mid, A_pad), lambda i: (0, 0)),
                pl.BlockSpec((1, A_pad), lambda i: (0, 0)),
            ],
            out_specs=pl.BlockSpec((rows, A_pad), lambda i: (i, 0)),
            scratch_shapes=[
                pltpu.VMEM((tile_n, PADL + W + 1, HC_mid), compute_dtype)],
        ),
        compiler_params=pltpu.CompilerParams(
            dimension_semantics=("parallel",)),     # batch axis parallel (v7x)
    )(x_in, m1, b1r, m2, b2r, wlr, blr)

    return out.reshape(N, W, A_pad)[:, :, :A]


def reference(x_nchw, params):
    """Pure-JAX f32 reference reproducing the PyTorch forward exactly."""
    w1, b1, w2, b2, wl, bl = params
    dn = ('NCHW', 'OIHW', 'NCHW')
    y = jax.lax.conv_general_dilated(x_nchw, w1, (1, 1), 'SAME',
                                     dimension_numbers=dn)
    y = jax.nn.relu(y + b1[None, :, None, None])
    y = jax.lax.conv_general_dilated(y, w2, (1, 1), 'SAME',
                                     dimension_numbers=dn)
    y = jax.nn.relu(y + b2[None, :, None, None])
    N, C, H, W = y.shape
    y = jnp.transpose(y.reshape(N, C * H, W), (0, 2, 1))   # view + transpose(1,2)
    return y @ wl.T + bl


if __name__ == "__main__":
    # Small shapes consistent with the module:
    #   feature_size=Cin=8, nh=Cout=32, pool_h=H=8, W=16, alphabet_len=38, N=2
    N, Cin, H, W = 2, 8, 8, 16
    nh, A = 32, 38

    key = jax.random.PRNGKey(0)
    ks = jax.random.split(key, 7)
    x = jax.random.normal(ks[0], (N, Cin, H, W), jnp.float32)
    w1 = jax.random.normal(ks[1], (nh, Cin, 3, 3), jnp.float32) * 0.1
    b1 = jax.random.normal(ks[2], (nh,), jnp.float32) * 0.1
    w2 = jax.random.normal(ks[3], (nh, nh, 3, 3), jnp.float32) * 0.05
    b2 = jax.random.normal(ks[4], (nh,), jnp.float32) * 0.1
    wl = jax.random.normal(ks[5], (A, nh * H), jnp.float32) * 0.05
    bl = jax.random.normal(ks[6], (A,), jnp.float32) * 0.1
    params = (w1, b1, w2, b2, wl, bl)

    out = recognition_forward(x, params)
    out = jax.block_until_ready(out)

    ref = reference(x, params)
    assert out.shape == (N, W, A), out.shape
    # bf16 MXU operands -> loosened tolerance vs the f32 reference
    max_err = float(jnp.max(jnp.abs(out - ref)))
    assert bool(jnp.allclose(out, ref, atol=5e-2, rtol=5e-2)), max_err
    print("KERNEL_OK")
</pallas_src>

<mosaic_0001>
module attributes {stable_mosaic.version = 11 : i64} {
  func.func @recog_kernel(%arg0: i32, %arg1: memref<2x18x64xbf16, #tpu.memory_space<vmem>>, %arg2: memref<3x64x256xbf16, #tpu.memory_space<vmem>>, %arg3: memref<1x256xf32, #tpu.memory_space<vmem>>, %arg4: memref<3x256x256xbf16, #tpu.memory_space<vmem>>, %arg5: memref<1x256xf32, #tpu.memory_space<vmem>>, %arg6: memref<256x128xbf16, #tpu.memory_space<vmem>>, %arg7: memref<1x128xf32, #tpu.memory_space<vmem>>, %arg8: memref<32x128xf32, #tpu.memory_space<vmem>>, %arg9: memref<2x33x256xbf16, #tpu.memory_space<vmem>>) attributes {dimension_semantics = [#tpu.dimension_semantics<parallel>], iteration_bounds = array<i64: 1>, scalar_prefetch = 0 : i64, scratch_operands = 1 : i64, tpu.core_type = #tpu.core_type<tc>, window_params = [{transform_indices = @transform_0, window_bounds = array<i64: 2, 18, 64>}, {pipeline_mode = #tpu.pipeline_mode<synchronous>, transform_indices = @transform_1, window_bounds = array<i64: 3, 64, 256>}, {pipeline_mode = #tpu.pipeline_mode<synchronous>, transform_indices = @transform_2, window_bounds = array<i64: 1, 256>}, {pipeline_mode = #tpu.pipeline_mode<synchronous>, transform_indices = @transform_3, window_bounds = array<i64: 3, 256, 256>}, {pipeline_mode = #tpu.pipeline_mode<synchronous>, transform_indices = @transform_4, window_bounds = array<i64: 1, 256>}, {pipeline_mode = #tpu.pipeline_mode<synchronous>, transform_indices = @transform_5, window_bounds = array<i64: 256, 128>}, {pipeline_mode = #tpu.pipeline_mode<synchronous>, transform_indices = @transform_6, window_bounds = array<i64: 1, 128>}, {transform_indices = @transform_7, window_bounds = array<i64: 32, 128>}]} {
    %cst = arith.constant 0.000000e+00 : bf16
    %0 = vector.broadcast %cst : bf16 to vector<2x1x256xbf16>
    %c0 = arith.constant 0 : index
    %c15 = arith.constant 15 : index
    %c0_0 = arith.constant 0 : index
    %1 = vector.load %arg9[%c0, %c15, %c0_0] : memref<2x33x256xbf16, #tpu.memory_space<vmem>>, vector<2x1x256xbf16>
    tpu.vector_store %arg9[%c0, %c15, %c0_0], %0 {strides = array<i32>} : memref<2x33x256xbf16, #tpu.memory_space<vmem>>, vector<2x1x256xbf16>,
    %cst_1 = arith.constant 0.000000e+00 : bf16
    %2 = vector.broadcast %cst_1 : bf16 to vector<2x1x256xbf16>
    %c0_2 = arith.constant 0 : index
    %c32 = arith.constant 32 : index
    %c0_3 = arith.constant 0 : index
    %3 = vector.load %arg9[%c0_2, %c32, %c0_3] : memref<2x33x256xbf16, #tpu.memory_space<vmem>>, vector<2x1x256xbf16>
    tpu.vector_store %arg9[%c0_2, %c32, %c0_3], %2 {strides = array<i32>} : memref<2x33x256xbf16, #tpu.memory_space<vmem>>, vector<2x1x256xbf16>,
    %cst_4 = arith.constant 0.000000e+00 : f32
    %4 = vector.broadcast %cst_4 : f32 to vector<32x256xf32>
    %c0_5 = arith.constant 0 : index
    %c0_6 = arith.constant 0 : index
    %c0_7 = arith.constant 0 : index
    %5 = vector.load %arg1[%c0_5, %c0_6, %c0_7] : memref<2x18x64xbf16, #tpu.memory_space<vmem>>, vector<2x16x64xbf16>
    %6 = vector.shape_cast %5 : vector<2x16x64xbf16> to vector<32x64xbf16>
    %c0_8 = arith.constant 0 : index
    %c0_9 = arith.constant 0 : index
    %c0_10 = arith.constant 0 : index
    %7 = vector.load %arg2[%c0_8, %c0_9, %c0_10] : memref<3x64x256xbf16, #tpu.memory_space<vmem>>, vector<1x64x256xbf16>
    %8 = vector.shape_cast %7 : vector<1x64x256xbf16> to vector<64x256xbf16>
    %cst_11 = arith.constant dense<0.000000e+00> : vector<32x256xf32>
    %9 = tpu.matmul %6, %8, %cst_11 {dimension_numbers = #tpu.dot_dimension_numbers<[1], [0], [0], [1], [0, 0, 1, 1], [], []>} : vector<32x64xbf16>, vector<64x256xbf16>, vector<32x256xf32> -> vector<32x256xf32>
    %10 = arith.addf %4, %9 : vector<32x256xf32>
    %c0_12 = arith.constant 0 : index
    %c1 = arith.constant 1 : index
    %c0_13 = arith.constant 0 : index
    %11 = vector.load %arg1[%c0_12, %c1, %c0_13] : memref<2x18x64xbf16, #tpu.memory_space<vmem>>, vector<2x16x64xbf16>
    %12 = vector.shape_cast %11 : vector<2x16x64xbf16> to vector<32x64xbf16>
    %c1_14 = arith.constant 1 : index
    %c0_15 = arith.constant 0 : index
    %c0_16 = arith.constant 0 : index
    %13 = vector.load %arg2[%c1_14, %c0_15, %c0_16] : memref<3x64x256xbf16, #tpu.memory_space<vmem>>, vector<1x64x256xbf16>
    %14 = vector.shape_cast %13 : vector<1x64x256xbf16> to vector<64x256xbf16>
    %cst_17 = arith.constant dense<0.000000e+00> : vector<32x256xf32>
    %15 = tpu.matmul %12, %14, %cst_17 {dimension_numbers = #tpu.dot_dimension_numbers<[1], [0], [0], [1], [0, 0, 1, 1], [], []>} : vector<32x64xbf16>, vector<64x256xbf16>, vector<32x256xf32> -> vector<32x256xf32>
    %16 = arith.addf %10, %15 : vector<32x256xf32>
    %c0_18 = arith.constant 0 : index
    %c2 = arith.constant 2 : index
    %c0_19 = arith.constant 0 : index
    %17 = vector.load %arg1[%c0_18, %c2, %c0_19] : memref<2x18x64xbf16, #tpu.memory_space<vmem>>, vector<2x16x64xbf16>
    %18 = vector.shape_cast %17 : vector<2x16x64xbf16> to vector<32x64xbf16>
    %c2_20 = arith.constant 2 : index
    %c0_21 = arith.constant 0 : index
    %c0_22 = arith.constant 0 : index
    %19 = vector.load %arg2[%c2_20, %c0_21, %c0_22] : memref<3x64x256xbf16, #tpu.memory_space<vmem>>, vector<1x64x256xbf16>
    %20 = vector.shape_cast %19 : vector<1x64x256xbf16> to vector<64x256xbf16>
    %cst_23 = arith.constant dense<0.000000e+00> : vector<32x256xf32>
    %21 = tpu.matmul %18, %20, %cst_23 {dimension_numbers = #tpu.dot_dimension_numbers<[1], [0], [0], [1], [0, 0, 1, 1], [], []>} : vector<32x64xbf16>, vector<64x256xbf16>, vector<32x256xf32> -> vector<32x256xf32>
    %22 = arith.addf %16, %21 : vector<32x256xf32>
    %c0_24 = arith.constant 0 : index
    %c0_25 = arith.constant 0 : index
    %23 = vector.load %arg3[%c0_24, %c0_25] : memref<1x256xf32, #tpu.memory_space<vmem>>, vector<1x256xf32>
    %24 = vector.broadcast %23 : vector<1x256xf32> to vector<32x256xf32>
    %25 = arith.addf %22, %24 : vector<32x256xf32>
    %cst_26 = arith.constant 0.000000e+00 : f32
    %26 = vector.broadcast %cst_26 : f32 to vector<32x256xf32>
    %27 = arith.maximumf %25, %26 : vector<32x256xf32>
    %28 = vector.shape_cast %27 : vector<32x256xf32> to vector<2x16x256xf32>
    %29 = arith.truncf %28 : vector<2x16x256xf32> to vector<2x16x256xbf16>
    %c0_27 = arith.constant 0 : index
    %c16 = arith.constant 16 : index
    %c0_28 = arith.constant 0 : index
    %30 = vector.load %arg9[%c0_27, %c16, %c0_28] : memref<2x33x256xbf16, #tpu.memory_space<vmem>>, vector<2x16x256xbf16>
    tpu.vector_store %arg9[%c0_27, %c16, %c0_28], %29 {strides = array<i32>} : memref<2x33x256xbf16, #tpu.memory_space<vmem>>, vector<2x16x256xbf16>,
    %cst_29 = arith.constant 0.000000e+00 : f32
    %31 = vector.broadcast %cst_29 : f32 to vector<32x256xf32>
    %c0_30 = arith.constant 0 : index
    %c15_31 = arith.constant 15 : index
    %c0_32 = arith.constant 0 : index
    %32 = vector.load %arg9[%c0_30, %c15_31, %c0_32] : memref<2x33x256xbf16, #tpu.memory_space<vmem>>, vector<2x16x256xbf16>
    %33 = vector.shape_cast %32 : vector<2x16x256xbf16> to vector<32x256xbf16>
    %c0_33 = arith.constant 0 : index
    %c0_34 = arith.constant 0 : index
    %c0_35 = arith.constant 0 : index
    %34 = vector.load %arg4[%c0_33, %c0_34, %c0_35] : memref<3x256x256xbf16, #tpu.memory_space<vmem>>, vector<1x256x256xbf16>
    %35 = vector.shape_cast %34 : vector<1x256x256xbf16> to vector<256x256xbf16>
    %cst_36 = arith.constant dense<0.000000e+00> : vector<32x256xf32>
    %36 = tpu.matmul %33, %35, %cst_36 {dimension_numbers = #tpu.dot_dimension_numbers<[1], [0], [0], [1], [0, 0, 1, 1], [], []>} : vector<32x256xbf16>, vector<256x256xbf16>, vector<32x256xf32> -> vector<32x256xf32>
    %37 = arith.addf %31, %36 : vector<32x256xf32>
    %c0_37 = arith.constant 0 : index
    %c16_38 = arith.constant 16 : index
    %c0_39 = arith.constant 0 : index
    %38 = vector.load %arg9[%c0_37, %c16_38, %c0_39] : memref<2x33x256xbf16, #tpu.memory_space<vmem>>, vector<2x16x256xbf16>
    %39 = vector.shape_cast %38 : vector<2x16x256xbf16> to vector<32x256xbf16>
    %c1_40 = arith.constant 1 : index
    %c0_41 = arith.constant 0 : index
    %c0_42 = arith.constant 0 : index
    %40 = vector.load %arg4[%c1_40, %c0_41, %c0_42] : memref<3x256x256xbf16, #tpu.memory_space<vmem>>, vector<1x256x256xbf16>
    %41 = vector.shape_cast %40 : vector<1x256x256xbf16> to vector<256x256xbf16>
    %cst_43 = arith.constant dense<0.000000e+00> : vector<32x256xf32>
    %42 = tpu.matmul %39, %41, %cst_43 {dimension_numbers = #tpu.dot_dimension_numbers<[1], [0], [0], [1], [0, 0, 1, 1], [], []>} : vector<32x256xbf16>, vector<256x256xbf16>, vector<32x256xf32> -> vector<32x256xf32>
    %43 = arith.addf %37, %42 : vector<32x256xf32>
    %c0_44 = arith.constant 0 : index
    %c17 = arith.constant 17 : index
    %c0_45 = arith.constant 0 : index
    %44 = vector.load %arg9[%c0_44, %c17, %c0_45] : memref<2x33x256xbf16, #tpu.memory_space<vmem>>, vector<2x16x256xbf16>
    %45 = vector.shape_cast %44 : vector<2x16x256xbf16> to vector<32x256xbf16>
    %c2_46 = arith.constant 2 : index
    %c0_47 = arith.constant 0 : index
    %c0_48 = arith.constant 0 : index
    %46 = vector.load %arg4[%c2_46, %c0_47, %c0_48] : memref<3x256x256xbf16, #tpu.memory_space<vmem>>, vector<1x256x256xbf16>
    %47 = vector.shape_cast %46 : vector<1x256x256xbf16> to vector<256x256xbf16>
    %cst_49 = arith.constant dense<0.000000e+00> : vector<32x256xf32>
    %48 = tpu.matmul %45, %47, %cst_49 {dimension_numbers = #tpu.dot_dimension_numbers<[1], [0], [0], [1], [0, 0, 1, 1], [], []>} : vector<32x256xbf16>, vector<256x256xbf16>, vector<32x256xf32> -> vector<32x256xf32>
    %49 = arith.addf %43, %48 : vector<32x256xf32>
    %c0_50 = arith.constant 0 : index
    %c0_51 = arith.constant 0 : index
    %50 = vector.load %arg5[%c0_50, %c0_51] : memref<1x256xf32, #tpu.memory_space<vmem>>, vector<1x256xf32>
    %51 = vector.broadcast %50 : vector<1x256xf32> to vector<32x256xf32>
    %52 = arith.addf %49, %51 : vector<32x256xf32>
    %cst_52 = arith.constant 0.000000e+00 : f32
    %53 = vector.broadcast %cst_52 : f32 to vector<32x256xf32>
    %54 = arith.maximumf %52, %53 : vector<32x256xf32>
    %55 = arith.truncf %54 : vector<32x256xf32> to vector<32x256xbf16>
    %c0_53 = arith.constant 0 : index
    %c0_54 = arith.constant 0 : index
    %56 = vector.load %arg6[%c0_53, %c0_54] : memref<256x128xbf16, #tpu.memory_space<vmem>>, vector<256x128xbf16>
    %cst_55 = arith.constant dense<0.000000e+00> : vector<32x128xf32>
    %57 = tpu.matmul %55, %56, %cst_55 {dimension_numbers = #tpu.dot_dimension_numbers<[1], [0], [0], [1], [0, 0, 1, 1], [], []>} : vector<32x256xbf16>, vector<256x128xbf16>, vector<32x128xf32> -> vector<32x128xf32>
    %c0_56 = arith.constant 0 : index
    %c0_57 = arith.constant 0 : index
    %58 = vector.load %arg7[%c0_56, %c0_57] : memref<1x128xf32, #tpu.memory_space<vmem>>, vector<1x128xf32>
    %59 = vector.broadcast %58 : vector<1x128xf32> to vector<32x128xf32>
    %60 = arith.addf %57, %59 : vector<32x128xf32>
    %c0_58 = arith.constant 0 : index
    %c0_59 = arith.constant 0 : index
    %61 = vector.load %arg8[%c0_58, %c0_59] : memref<32x128xf32, #tpu.memory_space<vmem>>, vector<32x128xf32>
    tpu.vector_store %arg8[%c0_58, %c0_59], %60 {strides = array<i32>} : memref<32x128xf32, #tpu.memory_space<vmem>>, vector<32x128xf32>,
    return
  }
  func.func @transform_0(%arg0: i32) -> (i32, i32, i32) {
    %c0_i32 = arith.constant 0 : i32
    %c0_i32_0 = arith.constant 0 : i32
    %c0_i32_1 = arith.constant 0 : i32
    return %arg0, %c0_i32, %c0_i32_0 : i32, i32, i32
  }
  func.func @transform_1(%arg0: i32) -> (i32, i32, i32) {
    %c0_i32 = arith.constant 0 : i32
    %c0_i32_0 = arith.constant 0 : i32
    %c0_i32_1 = arith.constant 0 : i32
    %c0_i32_2 = arith.constant 0 : i32
    return %c0_i32, %c0_i32_0, %c0_i32_1 : i32, i32, i32
  }
  func.func @transform_2(%arg0: i32) -> (i32, i32) {
    %c0_i32 = arith.constant 0 : i32
    %c0_i32_0 = arith.constant 0 : i32
    %c0_i32_1 = arith.constant 0 : i32
    return %c0_i32, %c0_i32_0 : i32, i32
  }
  func.func @transform_3(%arg0: i32) -> (i32, i32, i32) {
    %c0_i32 = arith.constant 0 : i32
    %c0_i32_0 = arith.constant 0 : i32
    %c0_i32_1 = arith.constant 0 : i32
    %c0_i32_2 = arith.constant 0 : i32
    return %c0_i32, %c0_i32_0, %c0_i32_1 : i32, i32, i32
  }
  func.func @transform_4(%arg0: i32) -> (i32, i32) {
    %c0_i32 = arith.constant 0 : i32
    %c0_i32_0 = arith.constant 0 : i32
    %c0_i32_1 = arith.constant 0 : i32
    return %c0_i32, %c0_i32_0 : i32, i32
  }
  func.func @transform_5(%arg0: i32) -> (i32, i32) {
    %c0_i32 = arith.constant 0 : i32
    %c0_i32_0 = arith.constant 0 : i32
    %c0_i32_1 = arith.constant 0 : i32
    return %c0_i32, %c0_i32_0 : i32, i32
  }
  func.func @transform_6(%arg0: i32) -> (i32, i32) {
    %c0_i32 = arith.constant 0 : i32
    %c0_i32_0 = arith.constant 0 : i32
    %c0_i32_1 = arith.constant 0 : i32
    return %c0_i32, %c0_i32_0 : i32, i32
  }
  func.func @transform_7(%arg0: i32) -> (i32, i32) {
    %c0_i32 = arith.constant 0 : i32
    %c0_i32_0 = arith.constant 0 : i32
    return %arg0, %c0_i32 : i32, i32
  }
}

</mosaic_0001>

<llo_original>
// kernel: tpu_custom_call.1
$region0: #{tpu_custom_call.1}
  #allocation0 [shape = 'u32[]', space=smem, size = 0x4, offset = 0x4, fixed_abs, tag = 'smem constant byte address 0x4 - core index']
  #allocation1 [shape = 'u32[144,128]{1,0:T(1,128)}', space=vmem, size = 0x12000, scoped, tag = 'internal scratch']
  #allocation2 [shape = 'bf16[2,33,256]{2,1,0:T(8,128)(2,1)}', space=vmem, size = 0xa000, scoped, tag = 'scratch operand']
  %s0 = inlined_call_operand.vmem [shape: bf16[2,18,64], index: 0, kind: input, shape index: {}]
  %s1 = inlined_call_operand.hbm [shape: bf16[3,64,256], index: 1, kind: input, shape index: {}]
  %s2 = inlined_call_operand.vmem [shape: f32[1,256], index: 2, kind: input, shape index: {}]
  %s3 = inlined_call_operand.hbm [shape: bf16[3,256,256], index: 3, kind: input, shape index: {}]
  %s4 = inlined_call_operand.vmem [shape: f32[1,256], index: 4, kind: input, shape index: {}]
  %s5 = inlined_call_operand.hbm [shape: bf16[256,128], index: 5, kind: input, shape index: {}]
  %s6 = inlined_call_operand.vmem [shape: f32[1,128], index: 6, kind: input, shape index: {}]
  %s7 = inlined_call_operand.hbm [shape: f32[32,128], index: 7, kind: output, shape index: {}]
  %s8 = sld [smem:[#allocation0]]
  $region50: #{tpu_custom_call.1} parent=0
    _
  %s10 = ssub.s32 1, %s8
  %s11 = scalar_select 0, %s10, %s8
  $region1: #{tpu_custom_call.1} parent=0
    #allocation3 [shape = 'u8[98304]{0}', space=vmem, size = 0x18000, scoped, tag = 'input window, operand 1, single buffered']
    #allocation4 [shape = 's32[1]{0}', space=sflag, size = 0x4, scoped, tag = 'scoped memory for tpu_custom_call.1']
    #allocation5 [shape = 's32[1]{0}', space=sflag, size = 0x4, scoped, tag = 'scoped memory for tpu_custom_call.1']
    #allocation6 [shape = 'u8[393216]{0}', space=vmem, size = 0x60000, scoped, tag = 'input window, operand 3, single buffered']
    #allocation7 [shape = 's32[1]{0}', space=sflag, size = 0x4, scoped, tag = 'scoped memory for tpu_custom_call.1']
    #allocation8 [shape = 'u8[65536]{0}', space=vmem, size = 0x10000, scoped, tag = 'input window, operand 5, single buffered']
    #allocation9 [shape = 'u8[16384]{0}', space=vmem, size = 0x4000, scoped, tag = 'output window, operand 0, single buffered']
    %12 = vsyncpa [#allocation4], 0
    %13 = vsyncpa [#allocation7], 0
    %14 = vsyncpa [#allocation5], 0
    // Predicated region
    $region2: #{tpu_custom_call.1} parent=1 // pred_check
      _
    $region3: #{tpu_custom_call.1} parent=1 // pred_check_branch
      %16 = sbr.rel (0) target = $region5
    $region4: #{tpu_custom_call.1} parent=1 // pred_region
      _
    $region5: #{tpu_custom_call.1} parent=1 // pred_fallthru
      _
    // Predicated region
    $region6: #{tpu_custom_call.1} parent=1 // pred_check
      _
    $region7: #{tpu_custom_call.1} parent=1 // pred_check_branch
      %18 = sbr.rel (0) target = $region9
    $region8: #{tpu_custom_call.1} parent=1 // pred_region
      %s20 = ssub.s32 3072, 3072
      %21 = vsyncadd [#allocation4], %s20
      %s22 = sshll.u32 [#allocation3], 4
      %s23 = int_to_ptr.vmem [resolvable:$true] %s22
      %28 = dma.hbm_to_vmem [thread:$0]  %s1, 3072, %s23, [#allocation4], 128, 128, 8
    $region9: #{tpu_custom_call.1} parent=1 // pred_fallthru
      _
    // Predicated region
    $region10: #{tpu_custom_call.1} parent=1 // pred_check
      _
    $region11: #{tpu_custom_call.1} parent=1 // pred_check_branch
      %30 = sbr.rel (0) target = $region13
    $region12: #{tpu_custom_call.1} parent=1 // pred_region
      _
    $region13: #{tpu_custom_call.1} parent=1 // pred_fallthru
      _
    // Predicated region
    $region14: #{tpu_custom_call.1} parent=1 // pred_check
      _
    $region15: #{tpu_custom_call.1} parent=1 // pred_check_branch
      %32 = sbr.rel (0) target = $region17
    $region16: #{tpu_custom_call.1} parent=1 // pred_region
      %s34 = ssub.s32 12288, 12288
      %35 = vsyncadd [#allocation7], %s34
      %s36 = sshll.u32 [#allocation6], 4
      %s37 = int_to_ptr.vmem [resolvable:$true] %s36
      %42 = dma.hbm_to_vmem [thread:$0]  %s3, 12288, %s37, [#allocation7], 128, 128, 8
    $region17: #{tpu_custom_call.1} parent=1 // pred_fallthru
      _
    // Predicated region
    $region18: #{tpu_custom_call.1} parent=1 // pred_check
      _
    $region19: #{tpu_custom_call.1} parent=1 // pred_check_branch
      %44 = sbr.rel (0) target = $region21
    $region20: #{tpu_custom_call.1} parent=1 // pred_region
      _
    $region21: #{tpu_custom_call.1} parent=1 // pred_fallthru
      _
    // Predicated region
    $region22: #{tpu_custom_call.1} parent=1 // pred_check
      _
    $region23: #{tpu_custom_call.1} parent=1 // pred_check_branch
      %46 = sbr.rel (0) target = $region25
    $region24: #{tpu_custom_call.1} parent=1 // pred_region
      %s48 = ssub.s32 2048, 2048
      %49 = vsyncadd [#allocation7], %s48
      %s50 = sshll.u32 [#allocation8], 4
      %s51 = int_to_ptr.vmem [resolvable:$true] %s50
      %56 = dma.hbm_to_vmem [thread:$0]  %s5, 2048, %s51, [#allocation7], 64, 64, 4
    $region25: #{tpu_custom_call.1} parent=1 // pred_fallthru
      _
    // Predicated region
    $region26: #{tpu_custom_call.1} parent=1 // pred_check
      _
    $region27: #{tpu_custom_call.1} parent=1 // pred_check_branch
      %58 = sbr.rel (0) target = $region29
    $region28: #{tpu_custom_call.1} parent=1 // pred_region
      _
    $region29: #{tpu_custom_call.1} parent=1 // pred_fallthru
      _
    // Predicated region
    $region30: #{tpu_custom_call.1} parent=1 // pred_check
      _
    $region31: #{tpu_custom_call.1} parent=1 // pred_check_branch
      %60 = sbr.rel (0) target = $region33
    $region32: #{tpu_custom_call.1} parent=1 // pred_region
      %61 = dma.done [#allocation4], 3072
    $region33: #{tpu_custom_call.1} parent=1 // pred_fallthru
      _
    // Predicated region
    $region34: #{tpu_custom_call.1} parent=1 // pred_check
      _
    $region35: #{tpu_custom_call.1} parent=1 // pred_check_branch
      %63 = sbr.rel (0) target = $region37
    $region36: #{tpu_custom_call.1} parent=1 // pred_region
      %64 = dma.done [#allocation7], 12288
    $region37: #{tpu_custom_call.1} parent=1 // pred_fallthru
      _
    // Predicated region
    $region38: #{tpu_custom_call.1} parent=1 // pred_check
      _
    $region39: #{tpu_custom_call.1} parent=1 // pred_check_branch
      %66 = sbr.rel (0) target = $region41
    $region40: #{tpu_custom_call.1} parent=1 // pred_region
      %67 = dma.done [#allocation7], 2048
    $region41: #{tpu_custom_call.1} parent=1 // pred_fallthru
      _
    %vm69 = vcmask 1043459
    %vm70 = vsmask.f32 7950
    %vm71 = vmand %vm69, %vm70
    %vm72 = vcmask 1047559
    %vm73 = vsmask.f32 7966
    %vm74 = vmand %vm72, %vm73
    %vm75 = vmor %vm74, %vm71
    %v76 = vld [vmem:[#allocation2 + $0x8] sm:$0x88]
    %v77 = vsel %vm75, 0, %v76
    %78 = vst [vmem:[#allocation2 + $0x8] sm:$0x88] %v77
    %v79 = vld [vmem:[#allocation2 + $0x30] sm:$0x88]
    %v80 = vsel %vm75, 0, %v79
    %81 = vst [vmem:[#allocation2 + $0x30] sm:$0x88] %v80
    %vm82 = vcmask 1040384
    %vm83 = vsmask.f32 256
    %vm84 = vmand %vm82, %vm83
    %vm85 = vcmask 1044484
    %vm86 = vsmask.f32 4352
    %vm87 = vmand %vm85, %vm86
    %vm88 = vmor %vm87, %vm84
    %v89 = vld [vmem:[#allocation2 + $0x20] sm:$0x11]
    %v90 = vsel %vm88, 0, %v89
    %91 = vst [vmem:[#allocation2 + $0x20] sm:$0x11] %v90
    %v92 = vld [vmem:[#allocation2 + $0x48] sm:$0x11]
    %v93 = vsel %vm88, 0, %v92
    %94 = vst [vmem:[#allocation2 + $0x48] sm:$0x11] %v93
    %v95 = vld [vmem:[%s0] sm:$0xf]
    %v96 = vld [vmem:[%s0 + $0x4] sm:$0xf]
    %v97 = vld [vmem:[%s0 + $0xc] sm:$0xf]
    %v98 = vld [vmem:[%s0 + $0x10] sm:$0xf]
    %v99 = vld [vmem:[#allocation3] sm:$0xff]
    %v100 = vld [vmem:[#allocation3 + $0x8] sm:$0xff]
    %v101 = vld [vmem:[#allocation3 + $0x10] sm:$0xff]
    %v102 = vld [vmem:[#allocation3 + $0x18] sm:$0xff]
    %v103 = vld [vmem:[#allocation3 + $0x20] sm:$0xff]
    %v104 = vld [vmem:[#allocation3 + $0x28] sm:$0xff]
    %v105 = vld [vmem:[#allocation3 + $0x30] sm:$0xff]
    %v106 = vld [vmem:[#allocation3 + $0x38] sm:$0xff]
    %v107 = vld [vmem:[%s0 + $0x8] sm:$0x1]
    %v108 = vld [vmem:[%s0 + $0x14] sm:$0x1]
    %vm109 = vsmask.f32 3328
    %vm110 = vsmask.f32 7440
    %vm111 = vmor %vm109, %vm110
    %v113 = vshrl.u32 %v95, 16
    %v115 = vrot.slane %v113, 4
    %v116 = vshll.u32 %v95, 16
    %v118 = vrot.slane %v116, 5
    %v119 = vor.u32 %v115, %v118
    %v120 = vrot.slane %v119, 4
    %v122 = vshll.u32 %v96, 16
    %v124 = vrot.slane %v122, 5
    %v125 = vsel %vm111, %v120, %v124
    %v126 = vshrl.u32 %v96, 16
    %v128 = vrot.slane %v126, 4
    %v129 = vor.u32 %v128, %v124
    %v130 = vrot.slane %v129, 4
    %v132 = vshll.u32 %v107, 16
    %v134 = vrot.slane %v132, 5
    %v135 = vsel %vm111, %v130, %v134
    %v137 = vshrl.u32 %v97, 16
    %v139 = vrot.slane %v137, 4
    %v140 = vshll.u32 %v97, 16
    %v142 = vrot.slane %v140, 5
    %v143 = vor.u32 %v139, %v142
    %v144 = vrot.slane %v143, 4
    %v146 = vshll.u32 %v98, 16
    %v148 = vrot.slane %v146, 5
    %v149 = vsel %vm111, %v144, %v148
    %v150 = vshrl.u32 %v98, 16
    %v152 = vrot.slane %v150, 4
    %v153 = vor.u32 %v152, %v148
    %v154 = vrot.slane %v153, 4
    %v156 = vshll.u32 %v108, 16
    %v158 = vrot.slane %v156, 5
    %v159 = vsel %vm111, %v154, %v158
    %s160 = scalar_lea.vmem [#allocation3], 64
    %v161 = vld [vmem:[%s160] sm:$0xff]
    %v162 = vld [vmem:[%s160 + $0x8] sm:$0xff]
    %v163 = vld [vmem:[%s160 + $0x10] sm:$0xff]
    %v164 = vld [vmem:[%s160 + $0x18] sm:$0xff]
    %v165 = vld [vmem:[%s160 + $0x20] sm:$0xff]
    %v166 = vld [vmem:[%s160 + $0x28] sm:$0xff]
    %v167 = vld [vmem:[%s160 + $0x30] sm:$0xff]
    %v168 = vld [vmem:[%s160 + $0x38] sm:$0xff]
    %v169 = vunpack.c.l.b16 %v125
    %v170 = vunpack.c.l.b16 %v135
    %v171 = vunpack.c.l.b16 %v149
    %v172 = vunpack.c.l.b16 %v159
    %v173 = vpack.c.b16 %v170, %v169
    %v174 = vpack.c.b16 %v172, %v171
    %v183 = vunpack.c.l.b16 %v161
    %v184 = vunpack.c.h.b16 %v161
    %v185 = vunpack.c.l.b16 %v162
    %v186 = vunpack.c.h.b16 %v162
    %v187 = vunpack.c.l.b16 %v163
    %v188 = vunpack.c.h.b16 %v163
    %v189 = vunpack.c.l.b16 %v164
    %v190 = vunpack.c.h.b16 %v164
    %v191 = vunpack.c.l.b16 %v165
    %v192 = vunpack.c.h.b16 %v165
    %v193 = vunpack.c.l.b16 %v166
    %v194 = vunpack.c.h.b16 %v166
    %v195 = vunpack.c.l.b16 %v167
    %v196 = vunpack.c.h.b16 %v167
    %v197 = vunpack.c.l.b16 %v168
    %v198 = vunpack.c.h.b16 %v168
    %v199 = vpack.c.b16 %v185, %v183
    %v200 = vpack.c.b16 %v186, %v184
    %v201 = vpack.c.b16 %v189, %v187
    %v202 = vpack.c.b16 %v190, %v188
    %v203 = vpack.c.b16 %v193, %v191
    %v204 = vpack.c.b16 %v194, %v192
    %v205 = vpack.c.b16 %v197, %v195
    %v206 = vpack.c.b16 %v198, %v196
    %vm215 = vcmask 523264
    %v217 = vsel %vm215, %v173, 0
    %v220 = vsel %vm215, %v174, 0
    %222 = vmatprep.subr.bf16.mxu0 %v200
    %223 = vmatpush1.bf16.msra.mxu0 %v199
    %224 = vmatprep.subr.bf16.mxu0 %v202
    %225 = vmatpush1.bf16.msra.mxu0 %v201
    %226 = vmatprep.subr.bf16.mxu0 %v204
    %227 = vmatpush1.bf16.msra.mxu0 %v203
    %228 = vmatprep.subr.bf16.mxu0 %v206
    %229 = vmatpush1.bf16.msra.mxu0 %v205
    %230 = vmatprep.subr.bf16.mxu0 0
    %231 = vmatpush1.bf16.msra.mxu0 0
    %232 = vmatprep.subr.bf16.mxu0 0
    %233 = vmatpush1.bf16.msra.mxu0 0
    %234 = vmatprep.subr.bf16.mxu0 0
    %235 = vmatpush1.bf16.msra.mxu0 0
    %236 = vmatprep.subr.bf16.mxu0 0
    %237 = vmatpush1.bf16.msra.mxu0 0
    %238 = vmatprep.subr.bf16.mxu0 0
    %239 = vmatpush1.bf16.msra.mxu0 0
    %240 = vmatprep.subr.bf16.mxu0 0
    %241 = vmatpush1.bf16.msra.mxu0 0
    %242 = vmatprep.subr.bf16.mxu0 0
    %243 = vmatpush1.bf16.msra.mxu0 0
    %244 = vmatprep.subr.bf16.mxu0 0
    %245 = vmatpush1.bf16.msra.mxu0 0
    %246 = vmatprep.subr.bf16.mxu0 0
    %247 = vmatpush1.bf16.msra.mxu0 0
    %248 = vmatprep.subr.bf16.mxu0 0
    %249 = vmatpush1.bf16.msra.mxu0 0
    %250 = vmatprep.subr.bf16.mxu0 0
    %251 = vmatpush1.bf16.msra.mxu0 0
    %252 = vmatprep.subr.bf16.mxu0 0
    %253 = vmatpush1.bf16.msra.mxu0 0
    %254 = vmatprep.mubr.bf16.mxu0 0
    %255 = vmatmul.mubr.bf16.gmra.mrb[0].mxu0 %v217
    %v256 = vpop.f32.mrb[0].mxu0
    %v257 = vadd.f32 0.0, %v256
    %v258 = vpop.f32.mrb[0].mxu0
    %v259 = vadd.f32 0.0, %v258
    %v260 = vpop.f32.mrb[0].mxu0
    %v261 = vadd.f32 0.0, %v260
    %v262 = vpop.f32.mrb[0].mxu0
    %v263 = vadd.f32 0.0, %v262
    %264 = vmatprep.mubr.bf16.mxu0 0
    %265 = vmatmul.mubr.bf16.gmra.mrb[0].mxu0 %v220
    %v266 = vpop.f32.mrb[0].mxu0
    %v267 = vadd.f32 0.0, %v266
    %v268 = vpop.f32.mrb[0].mxu0
    %v269 = vadd.f32 0.0, %v268
    %v270 = vpop.f32.mrb[0].mxu0
    %v271 = vadd.f32 0.0, %v270
    %v272 = vpop.f32.mrb[0].mxu0
    %v273 = vadd.f32 0.0, %v272
    %274 = vdwg.mxu0
    %v279 = vunpack.c.l.b16 %v95
    %v280 = vunpack.c.l.b16 %v96
    %v281 = vunpack.c.l.b16 %v97
    %v282 = vunpack.c.l.b16 %v98
    %v283 = vpack.c.b16 %v280, %v279
    %v284 = vpack.c.b16 %v282, %v281
    %v293 = vunpack.c.l.b16 %v99
    %v294 = vunpack.c.h.b16 %v99
    %v295 = vunpack.c.l.b16 %v100
    %v296 = vunpack.c.h.b16 %v100
    %v297 = vunpack.c.l.b16 %v101
    %v298 = vunpack.c.h.b16 %v101
    %v299 = vunpack.c.l.b16 %v102
    %v300 = vunpack.c.h.b16 %v102
    %v301 = vunpack.c.l.b16 %v103
    %v302 = vunpack.c.h.b16 %v103
    %v303 = vunpack.c.l.b16 %v104
    %v304 = vunpack.c.h.b16 %v104
    %v305 = vunpack.c.l.b16 %v105
    %v306 = vunpack.c.h.b16 %v105
    %v307 = vunpack.c.l.b16 %v106
    %v308 = vunpack.c.h.b16 %v106
    %v309 = vpack.c.b16 %v295, %v293
    %v310 = vpack.c.b16 %v296, %v294
    %v311 = vpack.c.b16 %v299, %v297
    %v312 = vpack.c.b16 %v300, %v298
    %v313 = vpack.c.b16 %v303, %v301
    %v314 = vpack.c.b16 %v304, %v302
    %v315 = vpack.c.b16 %v307, %v305
    %v316 = vpack.c.b16 %v308, %v306
    %v326 = vsel %vm215, %v283, 0
    %v329 = vsel %vm215, %v284, 0
    %331 = vmatprep.subr.bf16.mxu0 %v310
    %332 = vmatpush1.bf16.msra.mxu0 %v309
    %333 = vmatprep.subr.bf16.mxu0 %v312
    %334 = vmatpush1.bf16.msra.mxu0 %v311
    %335 = vmatprep.subr.bf16.mxu0 %v314
    %336 = vmatpush1.bf16.msra.mxu0 %v313
    %337 = vmatprep.subr.bf16.mxu0 %v316
    %338 = vmatpush1.bf16.msra.mxu0 %v315
    %339 = vmatprep.subr.bf16.mxu0 0
    %340 = vmatpush1.bf16.msra.mxu0 0
    %341 = vmatprep.subr.bf16.mxu0 0
    %342 = vmatpush1.bf16.msra.mxu0 0
    %343 = vmatprep.subr.bf16.mxu0 0
    %344 = vmatpush1.bf16.msra.mxu0 0
    %345 = vmatprep.subr.bf16.mxu0 0
    %346 = vmatpush1.bf16.msra.mxu0 0
    %347 = vmatprep.subr.bf16.mxu0 0
    %348 = vmatpush1.bf16.msra.mxu0 0
    %349 = vmatprep.subr.bf16.mxu0 0
    %350 = vmatpush1.bf16.msra.mxu0 0
    %351 = vmatprep.subr.bf16.mxu0 0
    %352 = vmatpush1.bf16.msra.mxu0 0
    %353 = vmatprep.subr.bf16.mxu0 0
    %354 = vmatpush1.bf16.msra.mxu0 0
    %355 = vmatprep.subr.bf16.mxu0 0
    %356 = vmatpush1.bf16.msra.mxu0 0
    %357 = vmatprep.subr.bf16.mxu0 0
    %358 = vmatpush1.bf16.msra.mxu0 0
    %359 = vmatprep.subr.bf16.mxu0 0
    %360 = vmatpush1.bf16.msra.mxu0 0
    %361 = vmatprep.subr.bf16.mxu0 0
    %362 = vmatpush1.bf16.msra.mxu0 0
    %363 = vmatprep.mubr.bf16.mxu0 0
    %364 = vmatmul.mubr.bf16.gmra.mrb[0].mxu0 %v326
    %v365 = vpop.f32.mrb[0].mxu0
    %v366 = vadd.f32 %v257, %v365
    %v367 = vpop.f32.mrb[0].mxu0
    %v368 = vadd.f32 %v259, %v367
    %v369 = vpop.f32.mrb[0].mxu0
    %v370 = vadd.f32 %v261, %v369
    %v371 = vpop.f32.mrb[0].mxu0
    %v372 = vadd.f32 %v263, %v371
    %373 = vmatprep.mubr.bf16.mxu0 0
    %374 = vmatmul.mubr.bf16.gmra.mrb[0].mxu0 %v329
    %v375 = vpop.f32.mrb[0].mxu0
    %v376 = vadd.f32 %v267, %v375
    %v377 = vpop.f32.mrb[0].mxu0
    %v378 = vadd.f32 %v269, %v377
    %v379 = vpop.f32.mrb[0].mxu0
    %v380 = vadd.f32 %v271, %v379
    %v381 = vpop.f32.mrb[0].mxu0
    %v382 = vadd.f32 %v273, %v381
    %383 = vdwg.mxu0
    %v384 = vld [vmem:[%s0] sm:$0xe]
    %v385 = vld [vmem:[%s0 + $0xc] sm:$0xe]
    %vm390 = vcmask 1042432
    %vm391 = vcmask 1046532
    %vm392 = vmor %vm390, %vm391
    %v393 = vrot.slane %v384, 5
    %v394 = vrot.slane %v393, 4
    %v395 = vrot.slane %v96, 5
    %v396 = vsel %vm392, %v394, %v395
    %v397 = vrot.slane %v395, 4
    %v398 = vrot.slane %v107, 5
    %v399 = vsel %vm392, %v397, %v398
    %v400 = vrot.slane %v385, 5
    %v401 = vrot.slane %v400, 4
    %v402 = vrot.slane %v98, 5
    %v403 = vsel %vm392, %v401, %v402
    %v404 = vrot.slane %v402, 4
    %v405 = vrot.slane %v108, 5
    %v406 = vsel %vm392, %v404, %v405
    %s407 = scalar_lea.vmem [#allocation3], 128
    %v408 = vld [vmem:[%s407] sm:$0xff]
    %v409 = vld [vmem:[%s407 + $0x8] sm:$0xff]
    %v410 = vld [vmem:[%s407 + $0x10] sm:$0xff]
    %v411 = vld [vmem:[%s407 + $0x18] sm:$0xff]
    %v412 = vld [vmem:[%s407 + $0x20] sm:$0xff]
    %v413 = vld [vmem:[%s407 + $0x28] sm:$0xff]
    %v414 = vld [vmem:[%s407 + $0x30] sm:$0xff]
    %v415 = vld [vmem:[%s407 + $0x38] sm:$0xff]
    %v416 = vunpack.c.l.b16 %v396
    %v417 = vunpack.c.l.b16 %v399
    %v418 = vunpack.c.l.b16 %v403
    %v419 = vunpack.c.l.b16 %v406
    %v420 = vpack.c.b16 %v417, %v416
    %v421 = vpack.c.b16 %v419, %v418
    %v430 = vunpack.c.l.b16 %v408
    %v431 = vunpack.c.h.b16 %v408
    %v432 = vunpack.c.l.b16 %v409
    %v433 = vunpack.c.h.b16 %v409
    %v434 = vunpack.c.l.b16 %v410
    %v435 = vunpack.c.h.b16 %v410
    %v436 = vunpack.c.l.b16 %v411
    %v437 = vunpack.c.h.b16 %v411
    %v438 = vunpack.c.l.b16 %v412
    %v439 = vunpack.c.h.b16 %v412
    %v440 = vunpack.c.l.b16 %v413
    %v441 = vunpack.c.h.b16 %v413
    %v442 = vunpack.c.l.b16 %v414
    %v443 = vunpack.c.h.b16 %v414
    %v444 = vunpack.c.l.b16 %v415
    %v445 = vunpack.c.h.b16 %v415
    %v446 = vpack.c.b16 %v432, %v430
    %v447 = vpack.c.b16 %v433, %v431
    %v448 = vpack.c.b16 %v436, %v434
    %v449 = vpack.c.b16 %v437, %v435
    %v450 = vpack.c.b16 %v440, %v438
    %v451 = vpack.c.b16 %v441, %v439
    %v452 = vpack.c.b16 %v444, %v442
    %v453 = vpack.c.b16 %v445, %v443
    %v463 = vsel %vm215, %v420, 0
    %v466 = vsel %vm215, %v421, 0
    %468 = vmatprep.subr.bf16.mxu0 %v447
    %469 = vmatpush1.bf16.msra.mxu0 %v446
    %470 = vmatprep.subr.bf16.mxu0 %v449
    %471 = vmatpush1.bf16.msra.mxu0 %v448
    %472 = vmatprep.subr.bf16.mxu0 %v451
    %473 = vmatpush1.bf16.msra.mxu0 %v450
    %474 = vmatprep.subr.bf16.mxu0 %v453
    %475 = vmatpush1.bf16.msra.mxu0 %v452
    %476 = vmatprep.subr.bf16.mxu0 0
    %477 = vmatpush1.bf16.msra.mxu0 0
    %478 = vmatprep.subr.bf16.mxu0 0
    %479 = vmatpush1.bf16.msra.mxu0 0
    %480 = vmatprep.subr.bf16.mxu0 0
    %481 = vmatpush1.bf16.msra.mxu0 0
    %482 = vmatprep.subr.bf16.mxu0 0
    %483 = vmatpush1.bf16.msra.mxu0 0
    %484 = vmatprep.subr.bf16.mxu0 0
    %485 = vmatpush1.bf16.msra.mxu0 0
    %486 = vmatprep.subr.bf16.mxu0 0
    %487 = vmatpush1.bf16.msra.mxu0 0
    %488 = vmatprep.subr.bf16.mxu0 0
    %489 = vmatpush1.bf16.msra.mxu0 0
    %490 = vmatprep.subr.bf16.mxu0 0
    %491 = vmatpush1.bf16.msra.mxu0 0
    %492 = vmatprep.subr.bf16.mxu0 0
    %493 = vmatpush1.bf16.msra.mxu0 0
    %494 = vmatprep.subr.bf16.mxu0 0
    %495 = vmatpush1.bf16.msra.mxu0 0
    %496 = vmatprep.subr.bf16.mxu0 0
    %497 = vmatpush1.bf16.msra.mxu0 0
    %498 = vmatprep.subr.bf16.mxu0 0
    %499 = vmatpush1.bf16.msra.mxu0 0
    %500 = vmatprep.mubr.bf16.mxu0 0
    %501 = vmatmul.mubr.bf16.gmra.mrb[0].mxu0 %v463
    %v502 = vpop.f32.mrb[0].mxu0
    %v503 = vadd.f32 0.0, %v502
    %v504 = vpop.f32.mrb[0].mxu0
    %v505 = vadd.f32 0.0, %v504
    %v506 = vpop.f32.mrb[0].mxu0
    %v507 = vadd.f32 0.0, %v506
    %v508 = vpop.f32.mrb[0].mxu0
    %v509 = vadd.f32 0.0, %v508
    %510 = vmatprep.mubr.bf16.mxu0 0
    %511 = vmatmul.mubr.bf16.gmra.mrb[0].mxu0 %v466
    %v512 = vpop.f32.mrb[0].mxu0
    %v513 = vadd.f32 0.0, %v512
    %v514 = vpop.f32.mrb[0].mxu0
    %v515 = vadd.f32 0.0, %v514
    %v516 = vpop.f32.mrb[0].mxu0
    %v517 = vadd.f32 0.0, %v516
    %v518 = vpop.f32.mrb[0].mxu0
    %v519 = vadd.f32 0.0, %v518
    %520 = vdwg.mxu0
    %v521 = vadd.f32 %v366, %v503
    %v522 = vadd.f32 %v368, %v505
    %v523 = vadd.f32 %v370, %v507
    %v524 = vadd.f32 %v372, %v509
    %v525 = vadd.f32 %v376, %v513
    %v526 = vadd.f32 %v378, %v515
    %v527 = vadd.f32 %v380, %v517
    %v528 = vadd.f32 %v382, %v519
    %v529 = vld [vmem:[%s2] sm:$0x3]
    %v531 = vlaneseq
    %v532 = vshrl.u32 %v531, 7
    %v533 = vsub.s32 0, %v532
    %v534 = vrot.slane %v529, %v533
    %v535 = vlaneseq
    %v536 = vshrl.u32 %v535, 7
    %v537 = vsub.s32 1, %v536
    %v538 = vrot.slane %v529, %v537
    %v541 = vadd.f32 %v521, %v534
    %v542 = vadd.f32 %v522, %v538
    %v543 = vadd.f32 %v523, %v534
    %v544 = vadd.f32 %v524, %v538
    %v545 = vadd.f32 %v525, %v534
    %v546 = vadd.f32 %v526, %v538
    %v547 = vadd.f32 %v527, %v534
    %v548 = vadd.f32 %v528, %v538
    %v549 = vmax.f32 %v541, 0.0
    %v550 = vmax.f32 %v542, 0.0
    %v551 = vmax.f32 %v543, 0.0
    %v552 = vmax.f32 %v544, 0.0
    %v553 = vmax.f32 %v545, 0.0
    %v554 = vmax.f32 %v546, 0.0
    %v555 = vmax.f32 %v547, 0.0
    %v556 = vmax.f32 %v548, 0.0
    %v557 = vpack.c.bf16 %v551, %v549
    %v558 = vpack.c.bf16 %v552, %v550
    %v559 = vpack.c.bf16 %v555, %v553
    %v560 = vpack.c.bf16 %v556, %v554
    %v565 = vunpack.c.l.b16 %v557
    %v566 = vunpack.c.l.b16 %v558
    %v567 = vunpack.c.h.b16 %v557
    %v568 = vunpack.c.h.b16 %v558
    %v569 = vunpack.c.l.b16 %v559
    %v570 = vunpack.c.l.b16 %v560
    %v571 = vunpack.c.h.b16 %v559
    %v572 = vunpack.c.h.b16 %v560
    %v573 = vpack.c.b16 %v566, %v565
    %v574 = vpack.c.b16 %v568, %v567
    %v575 = vpack.c.b16 %v570, %v569
    %v576 = vpack.c.b16 %v572, %v571
    %581 = vst [vmem:[#allocation2 + $0x10] sm:$0xff] %v573
    %582 = vst [vmem:[#allocation2 + $0x18] sm:$0xff] %v574
    %583 = vst [vmem:[#allocation2 + $0x38] sm:$0xff] %v575
    %584 = vst [vmem:[#allocation2 + $0x40] sm:$0xff] %v576
    %v585 = vld [vmem:[#allocation2 + $0x8] sm:$0x88]
    %v586 = vld [vmem:[#allocation2 + $0x10] sm:$0xff]
    %v587 = vld [vmem:[#allocation2 + $0x18] sm:$0xff]
    %v588 = vld [vmem:[#allocation2 + $0x30] sm:$0x88]
    %v589 = vld [vmem:[#allocation2 + $0x38] sm:$0xff]
    %v590 = vld [vmem:[#allocation2 + $0x40] sm:$0xff]
    %vm591 = vsmask.f32 4368
    %vm592 = vmor %vm83, %vm591
    %v594 = vshrl.u32 %v585, 16
    %v596 = vrot.slane %v594, 7
    %v597 = vrot.slane %v596, 4
    %v599 = vshrl.u32 %v586, 16
    %v601 = vrot.slane %v599, 7
    %v602 = vshll.u32 %v586, 16
    %v604 = vor.u32 %v601, %v602
    %v605 = vsel %vm592, %v597, %v604
    %v606 = vrot.slane %v601, 4
    %v608 = vshrl.u32 %v587, 16
    %v610 = vrot.slane %v608, 7
    %v611 = vshll.u32 %v587, 16
    %v613 = vor.u32 %v610, %v611
    %v614 = vsel %vm592, %v606, %v613
    %v616 = vshrl.u32 %v588, 16
    %v618 = vrot.slane %v616, 7
    %v619 = vrot.slane %v618, 4
    %v621 = vshrl.u32 %v589, 16
    %v623 = vrot.slane %v621, 7
    %v624 = vshll.u32 %v589, 16
    %v626 = vor.u32 %v623, %v624
    %v627 = vsel %vm592, %v619, %v626
    %v628 = vrot.slane %v623, 4
    %v630 = vshrl.u32 %v590, 16
    %v632 = vrot.slane %v630, 7
    %v633 = vshll.u32 %v590, 16
    %v635 = vor.u32 %v632, %v633
    %v636 = vsel %vm592, %v628, %v635
    %v637 = vld [vmem:[#allocation6] sm:$0xff]
    %v638 = vld [vmem:[#allocation6 + $0x8] sm:$0xff]
    %v639 = vld [vmem:[#allocation6 + $0x10] sm:$0xff]
    %v640 = vld [vmem:[#allocation6 + $0x18] sm:$0xff]
    %v641 = vld [vmem:[#allocation6 + $0x20] sm:$0xff]
    %v642 = vld [vmem:[#allocation6 + $0x28] sm:$0xff]
    %v643 = vld [vmem:[#allocation6 + $0x30] sm:$0xff]
    %v644 = vld [vmem:[#allocation6 + $0x38] sm:$0xff]
    %v645 = vld [vmem:[#allocation6 + $0x40] sm:$0xff]
    %v646 = vld [vmem:[#allocation6 + $0x48] sm:$0xff]
    %v647 = vld [vmem:[#allocation6 + $0x50] sm:$0xff]
    %v648 = vld [vmem:[#allocation6 + $0x58] sm:$0xff]
    %v649 = vld [vmem:[#allocation6 + $0x60] sm:$0xff]
    %v650 = vld [vmem:[#allocation6 + $0x68] sm:$0xff]
    %v651 = vld [vmem:[#allocation6 + $0x70] sm:$0xff]
    %v652 = vld [vmem:[#allocation6 + $0x78] sm:$0xff]
    %v653 = vld [vmem:[#allocation6 + $0x80] sm:$0xff]
    %v654 = vld [vmem:[#allocation6 + $0x88] sm:$0xff]
    %v655 = vld [vmem:[#allocation6 + $0x90] sm:$0xff]
    %v656 = vld [vmem:[#allocation6 + $0x98] sm:$0xff]
    %v657 = vld [vmem:[#allocation6 + $0xa0] sm:$0xff]
    %v658 = vld [vmem:[#allocation6 + $0xa8] sm:$0xff]
    %v659 = vld [vmem:[#allocation6 + $0xb0] sm:$0xff]
    %v660 = vld [vmem:[#allocation6 + $0xb8] sm:$0xff]
    %v661 = vld [vmem:[#allocation6 + $0xc0] sm:$0xff]
    %v662 = vld [vmem:[#allocation6 + $0xc8] sm:$0xff]
    %v663 = vld [vmem:[#allocation6 + $0xd0] sm:$0xff]
    %v664 = vld [vmem:[#allocation6 + $0xd8] sm:$0xff]
    %v665 = vld [vmem:[#allocation6 + $0xe0] sm:$0xff]
    %v666 = vld [vmem:[#allocation6 + $0xe8] sm:$0xff]
    %v667 = vld [vmem:[#allocation6 + $0xf0] sm:$0xff]
    %v668 = vld [vmem:[#allocation6 + $0xf8] sm:$0xff]
    %s669 = scalar_lea.vmem [#allocation6], 256
    %v670 = vld [vmem:[%s669] sm:$0xff]
    %v671 = vld [vmem:[%s669 + $0x8] sm:$0xff]
    %v672 = vld [vmem:[%s669 + $0x10] sm:$0xff]
    %v673 = vld [vmem:[%s669 + $0x18] sm:$0xff]
    %v674 = vld [vmem:[%s669 + $0x20] sm:$0xff]
    %v675 = vld [vmem:[%s669 + $0x28] sm:$0xff]
    %v676 = vld [vmem:[%s669 + $0x30] sm:$0xff]
    %v677 = vld [vmem:[%s669 + $0x38] sm:$0xff]
    %v678 = vld [vmem:[%s669 + $0x40] sm:$0xff]
    %v679 = vld [vmem:[%s669 + $0x48] sm:$0xff]
    %v680 = vld [vmem:[%s669 + $0x50] sm:$0xff]
    %v681 = vld [vmem:[%s669 + $0x58] sm:$0xff]
    %v682 = vld [vmem:[%s669 + $0x60] sm:$0xff]
    %v683 = vld [vmem:[%s669 + $0x68] sm:$0xff]
    %v684 = vld [vmem:[%s669 + $0x70] sm:$0xff]
    %v685 = vld [vmem:[%s669 + $0x78] sm:$0xff]
    %v686 = vld [vmem:[%s669 + $0x80] sm:$0xff]
    %v687 = vld [vmem:[%s669 + $0x88] sm:$0xff]
    %v688 = vld [vmem:[%s669 + $0x90] sm:$0xff]
    %v689 = vld [vmem:[%s669 + $0x98] sm:$0xff]
    %v690 = vld [vmem:[%s669 + $0xa0] sm:$0xff]
    %v691 = vld [vmem:[%s669 + $0xa8] sm:$0xff]
    %v692 = vld [vmem:[%s669 + $0xb0] sm:$0xff]
    %v693 = vld [vmem:[%s669 + $0xb8] sm:$0xff]
    %v694 = vld [vmem:[%s669 + $0xc0] sm:$0xff]
    %v695 = vld [vmem:[%s669 + $0xc8] sm:$0xff]
    %v696 = vld [vmem:[%s669 + $0xd0] sm:$0xff]
    %v697 = vld [vmem:[%s669 + $0xd8] sm:$0xff]
    %v698 = vld [vmem:[%s669 + $0xe0] sm:$0xff]
    %v699 = vld [vmem:[%s669 + $0xe8] sm:$0xff]
    %v700 = vld [vmem:[%s669 + $0xf0] sm:$0xff]
    %v701 = vld [vmem:[%s669 + $0xf8] sm:$0xff]
    %v706 = vunpack.c.l.b16 %v586
    %v707 = vunpack.c.h.b16 %v586
    %v708 = vunpack.c.l.b16 %v587
    %v709 = vunpack.c.h.b16 %v587
    %v710 = vunpack.c.l.b16 %v589
    %v711 = vunpack.c.h.b16 %v589
    %v712 = vunpack.c.l.b16 %v590
    %v713 = vunpack.c.h.b16 %v590
    %v714 = vpack.c.b16 %v708, %v706
    %v715 = vpack.c.b16 %v709, %v707
    %v716 = vpack.c.b16 %v712, %v710
    %v717 = vpack.c.b16 %v713, %v711
    %v754 = vunpack.c.l.b16 %v670
    %v755 = vunpack.c.h.b16 %v670
    %v756 = vunpack.c.l.b16 %v671
    %v757 = vunpack.c.h.b16 %v671
    %v758 = vunpack.c.l.b16 %v672
    %v759 = vunpack.c.h.b16 %v672
    %v760 = vunpack.c.l.b16 %v673
    %v761 = vunpack.c.h.b16 %v673
    %v762 = vunpack.c.l.b16 %v674
    %v763 = vunpack.c.h.b16 %v674
    %v764 = vunpack.c.l.b16 %v675
    %v765 = vunpack.c.h.b16 %v675
    %v766 = vunpack.c.l.b16 %v676
    %v767 = vunpack.c.h.b16 %v676
    %v768 = vunpack.c.l.b16 %v677
    %v769 = vunpack.c.h.b16 %v677
    %v770 = vunpack.c.l.b16 %v678
    %v771 = vunpack.c.h.b16 %v678
    %v772 = vunpack.c.l.b16 %v679
    %v773 = vunpack.c.h.b16 %v679
    %v774 = vunpack.c.l.b16 %v680
    %v775 = vunpack.c.h.b16 %v680
    %v776 = vunpack.c.l.b16 %v681
    %v777 = vunpack.c.h.b16 %v681
    %v778 = vunpack.c.l.b16 %v682
    %v779 = vunpack.c.h.b16 %v682
    %v780 = vunpack.c.l.b16 %v683
    %v781 = vunpack.c.h.b16 %v683
    %v782 = vunpack.c.l.b16 %v684
    %v783 = vunpack.c.h.b16 %v684
    %v784 = vunpack.c.l.b16 %v685
    %v785 = vunpack.c.h.b16 %v685
    %v786 = vunpack.c.l.b16 %v686
    %v787 = vunpack.c.h.b16 %v686
    %v788 = vunpack.c.l.b16 %v687
    %v789 = vunpack.c.h.b16 %v687
    %v790 = vunpack.c.l.b16 %v688
    %v791 = vunpack.c.h.b16 %v688
    %v792 = vunpack.c.l.b16 %v689
    %v793 = vunpack.c.h.b16 %v689
    %v794 = vunpack.c.l.b16 %v690
    %v795 = vunpack.c.h.b16 %v690
    %v796 = vunpack.c.l.b16 %v691
    %v797 = vunpack.c.h.b16 %v691
    %v798 = vunpack.c.l.b16 %v692
    %v799 = vunpack.c.h.b16 %v692
    %v800 = vunpack.c.l.b16 %v693
    %v801 = vunpack.c.h.b16 %v693
    %v802 = vunpack.c.l.b16 %v694
    %v803 = vunpack.c.h.b16 %v694
    %v804 = vunpack.c.l.b16 %v695
    %v805 = vunpack.c.h.b16 %v695
    %v806 = vunpack.c.l.b16 %v696
    %v807 = vunpack.c.h.b16 %v696
    %v808 = vunpack.c.l.b16 %v697
    %v809 = vunpack.c.h.b16 %v697
    %v810 = vunpack.c.l.b16 %v698
    %v811 = vunpack.c.h.b16 %v698
    %v812 = vunpack.c.l.b16 %v699
    %v813 = vunpack.c.h.b16 %v699
    %v814 = vunpack.c.l.b16 %v700
    %v815 = vunpack.c.h.b16 %v700
    %v816 = vunpack.c.l.b16 %v701
    %v817 = vunpack.c.h.b16 %v701
    %v818 = vpack.c.b16 %v756, %v754
    %v819 = vpack.c.b16 %v757, %v755
    %v820 = vpack.c.b16 %v760, %v758
    %v821 = vpack.c.b16 %v761, %v759
    %v822 = vpack.c.b16 %v764, %v762
    %v823 = vpack.c.b16 %v765, %v763
    %v824 = vpack.c.b16 %v768, %v766
    %v825 = vpack.c.b16 %v769, %v767
    %v826 = vpack.c.b16 %v772, %v770
    %v827 = vpack.c.b16 %v773, %v771
    %v828 = vpack.c.b16 %v776, %v774
    %v829 = vpack.c.b16 %v777, %v775
    %v830 = vpack.c.b16 %v780, %v778
    %v831 = vpack.c.b16 %v781, %v779
    %v832 = vpack.c.b16 %v784, %v782
    %v833 = vpack.c.b16 %v785, %v783
    %v834 = vpack.c.b16 %v788, %v786
    %v835 = vpack.c.b16 %v789, %v787
    %v836 = vpack.c.b16 %v792, %v790
    %v837 = vpack.c.b16 %v793, %v791
    %v838 = vpack.c.b16 %v796, %v794
    %v839 = vpack.c.b16 %v797, %v795
    %v840 = vpack.c.b16 %v800, %v798
    %v841 = vpack.c.b16 %v801, %v799
    %v842 = vpack.c.b16 %v804, %v802
    %v843 = vpack.c.b16 %v805, %v803
    %v844 = vpack.c.b16 %v808, %v806
    %v845 = vpack.c.b16 %v809, %v807
    %v846 = vpack.c.b16 %v812, %v810
    %v847 = vpack.c.b16 %v813, %v811
    %v848 = vpack.c.b16 %v816, %v814
    %v849 = vpack.c.b16 %v817, %v815
    %882 = vmatprep.subr.bf16.mxu0 %v819
    %883 = vmatpush1.bf16.msra.mxu0 %v818
    %884 = vmatprep.subr.bf16.mxu0 %v821
    %885 = vmatpush1.bf16.msra.mxu0 %v820
    %886 = vmatprep.subr.bf16.mxu0 %v823
    %887 = vmatpush1.bf16.msra.mxu0 %v822
    %888 = vmatprep.subr.bf16.mxu0 %v825
    %889 = vmatpush1.bf16.msra.mxu0 %v824
    %890 = vmatprep.subr.bf16.mxu0 %v827
    %891 = vmatpush1.bf16.msra.mxu0 %v826
    %892 = vmatprep.subr.bf16.mxu0 %v829
    %893 = vmatpush1.bf16.msra.mxu0 %v828
    %894 = vmatprep.subr.bf16.mxu0 %v831
    %895 = vmatpush1.bf16.msra.mxu0 %v830
    %896 = vmatprep.subr.bf16.mxu0 %v833
    %897 = vmatpush1.bf16.msra.mxu0 %v832
    %898 = vmatprep.subr.bf16.mxu0 %v835
    %899 = vmatpush1.bf16.msra.mxu0 %v834
    %900 = vmatprep.subr.bf16.mxu0 %v837
    %901 = vmatpush1.bf16.msra.mxu0 %v836
    %902 = vmatprep.subr.bf16.mxu0 %v839
    %903 = vmatpush1.bf16.msra.mxu0 %v838
    %904 = vmatprep.subr.bf16.mxu0 %v841
    %905 = vmatpush1.bf16.msra.mxu0 %v840
    %906 = vmatprep.subr.bf16.mxu0 %v843
    %907 = vmatpush1.bf16.msra.mxu0 %v842
    %908 = vmatprep.subr.bf16.mxu0 %v845
    %909 = vmatpush1.bf16.msra.mxu0 %v844
    %910 = vmatprep.subr.bf16.mxu0 %v847
    %911 = vmatpush1.bf16.msra.mxu0 %v846
    %912 = vmatprep.subr.bf16.mxu0 %v849
    %913 = vmatpush1.bf16.msra.mxu0 %v848
    %914 = vmatprep.mubr.bf16.mxu0 %v715
    %915 = vmatmul.mubr.bf16.gmra.mrb[0].mxu0 %v714
    %v916 = vpop.f32.mrb[0].mxu0
    %v917 = vadd.f32 0.0, %v916
    %v918 = vpop.f32.mrb[0].mxu0
    %v919 = vadd.f32 0.0, %v918
    %v920 = vpop.f32.mrb[0].mxu0
    %v921 = vadd.f32 0.0, %v920
    %v922 = vpop.f32.mrb[0].mxu0
    %v923 = vadd.f32 0.0, %v922
    %924 = vmatprep.mubr.bf16.mxu0 %v717
    %925 = vmatmul.mubr.bf16.gmra.mrb[0].mxu0 %v716
    %v926 = vpop.f32.mrb[0].mxu0
    %v927 = vadd.f32 0.0, %v926
    %v928 = vpop.f32.mrb[0].mxu0
    %v929 = vadd.f32 0.0, %v928
    %v930 = vpop.f32.mrb[0].mxu0
    %v931 = vadd.f32 0.0, %v930
    %v932 = vpop.f32.mrb[0].mxu0
    %v933 = vadd.f32 0.0, %v932
    %934 = vdwg.mxu0
    %v935 = vunpack.c.l.b16 %v605
    %v936 = vunpack.c.h.b16 %v605
    %v937 = vunpack.c.l.b16 %v614
    %v938 = vunpack.c.h.b16 %v614
    %v939 = vunpack.c.l.b16 %v627
    %v940 = vunpack.c.h.b16 %v627
    %v941 = vunpack.c.l.b16 %v636
    %v942 = vunpack.c.h.b16 %v636
    %v943 = vpack.c.b16 %v937, %v935
    %v944 = vpack.c.b16 %v938, %v936
    %v945 = vpack.c.b16 %v941, %v939
    %v946 = vpack.c.b16 %v942, %v940
    %v983 = vunpack.c.l.b16 %v637
    %v984 = vunpack.c.h.b16 %v637
    %v985 = vunpack.c.l.b16 %v638
    %v986 = vunpack.c.h.b16 %v638
    %v987 = vunpack.c.l.b16 %v639
    %v988 = vunpack.c.h.b16 %v639
    %v989 = vunpack.c.l.b16 %v640
    %v990 = vunpack.c.h.b16 %v640
    %v991 = vunpack.c.l.b16 %v641
    %v992 = vunpack.c.h.b16 %v641
    %v993 = vunpack.c.l.b16 %v642
    %v994 = vunpack.c.h.b16 %v642
    %v995 = vunpack.c.l.b16 %v643
    %v996 = vunpack.c.h.b16 %v643
    %v997 = vunpack.c.l.b16 %v644
    %v998 = vunpack.c.h.b16 %v644
    %v999 = vunpack.c.l.b16 %v645
    %v1000 = vunpack.c.h.b16 %v645
    %v1001 = vunpack.c.l.b16 %v646
    %v1002 = vunpack.c.h.b16 %v646
    %v1003 = vunpack.c.l.b16 %v647
    %v1004 = vunpack.c.h.b16 %v647
    %v1005 = vunpack.c.l.b16 %v648
    %v1006 = vunpack.c.h.b16 %v648
    %v1007 = vunpack.c.l.b16 %v649
    %v1008 = vunpack.c.h.b16 %v649
    %v1009 = vunpack.c.l.b16 %v650
    %v1010 = vunpack.c.h.b16 %v650
    %v1011 = vunpack.c.l.b16 %v651
    %v1012 = vunpack.c.h.b16 %v651
    %v1013 = vunpack.c.l.b16 %v652
    %v1014 = vunpack.c.h.b16 %v652
    %v1015 = vunpack.c.l.b16 %v653
    %v1016 = vunpack.c.h.b16 %v653
    %v1017 = vunpack.c.l.b16 %v654
    %v1018 = vunpack.c.h.b16 %v654
    %v1019 = vunpack.c.l.b16 %v655
    %v1020 = vunpack.c.h.b16 %v655
    %v1021 = vunpack.c.l.b16 %v656
    %v1022 = vunpack.c.h.b16 %v656
    %v1023 = vunpack.c.l.b16 %v657
    %v1024 = vunpack.c.h.b16 %v657
    %v1025 = vunpack.c.l.b16 %v658
    %v1026 = vunpack.c.h.b16 %v658
    %v1027 = vunpack.c.l.b16 %v659
    %v1028 = vunpack.c.h.b16 %v659
    %v1029 = vunpack.c.l.b16 %v660
    %v1030 = vunpack.c.h.b16 %v660
    %v1031 = vunpack.c.l.b16 %v661
    %v1032 = vunpack.c.h.b16 %v661
    %v1033 = vunpack.c.l.b16 %v662
    %v1034 = vunpack.c.h.b16 %v662
    %v1035 = vunpack.c.l.b16 %v663
    %v1036 = vunpack.c.h.b16 %v663
    %v1037 = vunpack.c.l.b16 %v664
    %v1038 = vunpack.c.h.b16 %v664
    %v1039 = vunpack.c.l.b16 %v665
    %v1040 = vunpack.c.h.b16 %v665
    %v1041 = vunpack.c.l.b16 %v666
    %v1042 = vunpack.c.h.b16 %v666
    %v1043 = vunpack.c.l.b16 %v667
    %v1044 = vunpack.c.h.b16 %v667
    %v1045 = vunpack.c.l.b16 %v668
    %v1046 = vunpack.c.h.b16 %v668
    %v1047 = vpack.c.b16 %v985, %v983
    %v1048 = vpack.c.b16 %v986, %v984
    %v1049 = vpack.c.b16 %v989, %v987
    %v1050 = vpack.c.b16 %v990, %v988
    %v1051 = vpack.c.b16 %v993, %v991
    %v1052 = vpack.c.b16 %v994, %v992
    %v1053 = vpack.c.b16 %v997, %v995
    %v1054 = vpack.c.b16 %v998, %v996
    %v1055 = vpack.c.b16 %v1001, %v999
    %v1056 = vpack.c.b16 %v1002, %v1000
    %v1057 = vpack.c.b16 %v1005, %v1003
    %v1058 = vpack.c.b16 %v1006, %v1004
    %v1059 = vpack.c.b16 %v1009, %v1007
    %v1060 = vpack.c.b16 %v1010, %v1008
    %v1061 = vpack.c.b16 %v1013, %v1011
    %v1062 = vpack.c.b16 %v1014, %v1012
    %v1063 = vpack.c.b16 %v1017, %v1015
    %v1064 = vpack.c.b16 %v1018, %v1016
    %v1065 = vpack.c.b16 %v1021, %v1019
    %v1066 = vpack.c.b16 %v1022, %v1020
    %v1067 = vpack.c.b16 %v1025, %v1023
    %v1068 = vpack.c.b16 %v1026, %v1024
    %v1069 = vpack.c.b16 %v1029, %v1027
    %v1070 = vpack.c.b16 %v1030, %v1028
    %v1071 = vpack.c.b16 %v1033, %v1031
    %v1072 = vpack.c.b16 %v1034, %v1032
    %v1073 = vpack.c.b16 %v1037, %v1035
    %v1074 = vpack.c.b16 %v1038, %v1036
    %v1075 = vpack.c.b16 %v1041, %v1039
    %v1076 = vpack.c.b16 %v1042, %v1040
    %v1077 = vpack.c.b16 %v1045, %v1043
    %v1078 = vpack.c.b16 %v1046, %v1044
    %1111 = vmatprep.subr.bf16.mxu0 %v1048
    %1112 = vmatpush1.bf16.msra.mxu0 %v1047
    %1113 = vmatprep.subr.bf16.mxu0 %v1050
    %1114 = vmatpush1.bf16.msra.mxu0 %v1049
    %1115 = vmatprep.subr.bf16.mxu0 %v1052
    %1116 = vmatpush1.bf16.msra.mxu0 %v1051
    %1117 = vmatprep.subr.bf16.mxu0 %v1054
    %1118 = vmatpush1.bf16.msra.mxu0 %v1053
    %1119 = vmatprep.subr.bf16.mxu0 %v1056
    %1120 = vmatpush1.bf16.msra.mxu0 %v1055
    %1121 = vmatprep.subr.bf16.mxu0 %v1058
    %1122 = vmatpush1.bf16.msra.mxu0 %v1057
    %1123 = vmatprep.subr.bf16.mxu0 %v1060
    %1124 = vmatpush1.bf16.msra.mxu0 %v1059
    %1125 = vmatprep.subr.bf16.mxu0 %v1062
    %1126 = vmatpush1.bf16.msra.mxu0 %v1061
    %1127 = vmatprep.subr.bf16.mxu0 %v1064
    %1128 = vmatpush1.bf16.msra.mxu0 %v1063
    %1129 = vmatprep.subr.bf16.mxu0 %v1066
    %1130 = vmatpush1.bf16.msra.mxu0 %v1065
    %1131 = vmatprep.subr.bf16.mxu0 %v1068
    %1132 = vmatpush1.bf16.msra.mxu0 %v1067
    %1133 = vmatprep.subr.bf16.mxu0 %v1070
    %1134 = vmatpush1.bf16.msra.mxu0 %v1069
    %1135 = vmatprep.subr.bf16.mxu0 %v1072
    %1136 = vmatpush1.bf16.msra.mxu0 %v1071
    %1137 = vmatprep.subr.bf16.mxu0 %v1074
    %1138 = vmatpush1.bf16.msra.mxu0 %v1073
    %1139 = vmatprep.subr.bf16.mxu0 %v1076
    %1140 = vmatpush1.bf16.msra.mxu0 %v1075
    %1141 = vmatprep.subr.bf16.mxu0 %v1078
    %1142 = vmatpush1.bf16.msra.mxu0 %v1077
    %1143 = vmatprep.mubr.bf16.mxu0 %v944
    %1144 = vmatmul.mubr.bf16.gmra.mrb[0].mxu0 %v943
    %v1145 = vpop.f32.mrb[0].mxu0
    %v1146 = vadd.f32 %v917, %v1145
    %v1147 = vpop.f32.mrb[0].mxu0
    %v1148 = vadd.f32 %v919, %v1147
    %v1149 = vpop.f32.mrb[0].mxu0
    %v1150 = vadd.f32 %v921, %v1149
    %v1151 = vpop.f32.mrb[0].mxu0
    %v1152 = vadd.f32 %v923, %v1151
    %1153 = vmatprep.mubr.bf16.mxu0 %v946
    %1154 = vmatmul.mubr.bf16.gmra.mrb[0].mxu0 %v945
    %v1155 = vpop.f32.mrb[0].mxu0
    %v1156 = vadd.f32 %v927, %v1155
    %v1157 = vpop.f32.mrb[0].mxu0
    %v1158 = vadd.f32 %v929, %v1157
    %v1159 = vpop.f32.mrb[0].mxu0
    %v1160 = vadd.f32 %v931, %v1159
    %v1161 = vpop.f32.mrb[0].mxu0
    %v1162 = vadd.f32 %v933, %v1161
    %1163 = vdwg.mxu0
    %v1164 = vld [vmem:[#allocation2 + $0x10] sm:$0xff]
    %v1165 = vld [vmem:[#allocation2 + $0x18] sm:$0xff]
    %v1166 = vld [vmem:[#allocation2 + $0x20] sm:$0x11]
    %v1167 = vld [vmem:[#allocation2 + $0x38] sm:$0xff]
    %v1168 = vld [vmem:[#allocation2 + $0x40] sm:$0xff]
    %v1169 = vld [vmem:[#allocation2 + $0x48] sm:$0x11]
    %v1171 = vshrl.u32 %v1164, 16
    %v1173 = vrot.slane %v1171, 4
    %v1174 = vshll.u32 %v1164, 16
    %v1176 = vrot.slane %v1174, 5
    %v1177 = vor.u32 %v1173, %v1176
    %v1178 = vrot.slane %v1177, 4
    %v1180 = vshll.u32 %v1165, 16
    %v1182 = vrot.slane %v1180, 5
    %v1183 = vsel %vm111, %v1178, %v1182
    %v1184 = vshrl.u32 %v1165, 16
    %v1186 = vrot.slane %v1184, 4
    %v1187 = vor.u32 %v1186, %v1182
    %v1188 = vrot.slane %v1187, 4
    %v1190 = vshll.u32 %v1166, 16
    %v1192 = vrot.slane %v1190, 5
    %v1193 = vsel %vm111, %v1188, %v1192
    %v1195 = vshrl.u32 %v1167, 16
    %v1197 = vrot.slane %v1195, 4
    %v1198 = vshll.u32 %v1167, 16
    %v1200 = vrot.slane %v1198, 5
    %v1201 = vor.u32 %v1197, %v1200
    %v1202 = vrot.slane %v1201, 4
    %v1204 = vshll.u32 %v1168, 16
    %v1206 = vrot.slane %v1204, 5
    %v1207 = vsel %vm111, %v1202, %v1206
    %v1208 = vshrl.u32 %v1168, 16
    %v1210 = vrot.slane %v1208, 4
    %v1211 = vor.u32 %v1210, %v1206
    %v1212 = vrot.slane %v1211, 4
    %v1214 = vshll.u32 %v1169, 16
    %v1216 = vrot.slane %v1214, 5
    %v1217 = vsel %vm111, %v1212, %v1216
    %s1218 = scalar_lea.vmem [#allocation6], 512
    %v1219 = vld [vmem:[%s1218] sm:$0xff]
    %v1220 = vld [vmem:[%s1218 + $0x8] sm:$0xff]
    %v1221 = vld [vmem:[%s1218 + $0x10] sm:$0xff]
    %v1222 = vld [vmem:[%s1218 + $0x18] sm:$0xff]
    %v1223 = vld [vmem:[%s1218 + $0x20] sm:$0xff]
    %v1224 = vld [vmem:[%s1218 + $0x28] sm:$0xff]
    %v1225 = vld [vmem:[%s1218 + $0x30] sm:$0xff]
    %v1226 = vld [vmem:[%s1218 + $0x38] sm:$0xff]
    %v1227 = vld [vmem:[%s1218 + $0x40] sm:$0xff]
    %v1228 = vld [vmem:[%s1218 + $0x48] sm:$0xff]
    %v1229 = vld [vmem:[%s1218 + $0x50] sm:$0xff]
    %v1230 = vld [vmem:[%s1218 + $0x58] sm:$0xff]
    %v1231 = vld [vmem:[%s1218 + $0x60] sm:$0xff]
    %v1232 = vld [vmem:[%s1218 + $0x68] sm:$0xff]
    %v1233 = vld [vmem:[%s1218 + $0x70] sm:$0xff]
    %v1234 = vld [vmem:[%s1218 + $0x78] sm:$0xff]
    %v1235 = vld [vmem:[%s1218 + $0x80] sm:$0xff]
    %v1236 = vld [vmem:[%s1218 + $0x88] sm:$0xff]
    %v1237 = vld [vmem:[%s1218 + $0x90] sm:$0xff]
    %v1238 = vld [vmem:[%s1218 + $0x98] sm:$0xff]
    %v1239 = vld [vmem:[%s1218 + $0xa0] sm:$0xff]
    %v1240 = vld [vmem:[%s1218 + $0xa8] sm:$0xff]
    %v1241 = vld [vmem:[%s1218 + $0xb0] sm:$0xff]
    %v1242 = vld [vmem:[%s1218 + $0xb8] sm:$0xff]
    %v1243 = vld [vmem:[%s1218 + $0xc0] sm:$0xff]
    %v1244 = vld [vmem:[%s1218 + $0xc8] sm:$0xff]
    %v1245 = vld [vmem:[%s1218 + $0xd0] sm:$0xff]
    %v1246 = vld [vmem:[%s1218 + $0xd8] sm:$0xff]
    %v1247 = vld [vmem:[%s1218 + $0xe0] sm:$0xff]
    %v1248 = vld [vmem:[%s1218 + $0xe8] sm:$0xff]
    %v1249 = vld [vmem:[%s1218 + $0xf0] sm:$0xff]
    %v1250 = vld [vmem:[%s1218 + $0xf8] sm:$0xff]
    %v1251 = vunpack.c.l.b16 %v1183
    %v1252 = vunpack.c.h.b16 %v1183
    %v1253 = vunpack.c.l.b16 %v1193
    %v1254 = vunpack.c.h.b16 %v1193
    %v1255 = vunpack.c.l.b16 %v1207
    %v1256 = vunpack.c.h.b16 %v1207
    %v1257 = vunpack.c.l.b16 %v1217
    %v1258 = vunpack.c.h.b16 %v1217
    %v1259 = vpack.c.b16 %v1253, %v1251
    %v1260 = vpack.c.b16 %v1254, %v1252
    %v1261 = vpack.c.b16 %v1257, %v1255
    %v1262 = vpack.c.b16 %v1258, %v1256
    %v1299 = vunpack.c.l.b16 %v1219
    %v1300 = vunpack.c.h.b16 %v1219
    %v1301 = vunpack.c.l.b16 %v1220
    %v1302 = vunpack.c.h.b16 %v1220
    %v1303 = vunpack.c.l.b16 %v1221
    %v1304 = vunpack.c.h.b16 %v1221
    %v1305 = vunpack.c.l.b16 %v1222
    %v1306 = vunpack.c.h.b16 %v1222
    %v1307 = vunpack.c.l.b16 %v1223
    %v1308 = vunpack.c.h.b16 %v1223
    %v1309 = vunpack.c.l.b16 %v1224
    %v1310 = vunpack.c.h.b16 %v1224
    %v1311 = vunpack.c.l.b16 %v1225
    %v1312 = vunpack.c.h.b16 %v1225
    %v1313 = vunpack.c.l.b16 %v1226
    %v1314 = vunpack.c.h.b16 %v1226
    %v1315 = vunpack.c.l.b16 %v1227
    %v1316 = vunpack.c.h.b16 %v1227
    %v1317 = vunpack.c.l.b16 %v1228
    %v1318 = vunpack.c.h.b16 %v1228
    %v1319 = vunpack.c.l.b16 %v1229
    %v1320 = vunpack.c.h.b16 %v1229
    %v1321 = vunpack.c.l.b16 %v1230
    %v1322 = vunpack.c.h.b16 %v1230
    %v1323 = vunpack.c.l.b16 %v1231
    %v1324 = vunpack.c.h.b16 %v1231
    %v1325 = vunpack.c.l.b16 %v1232
    %v1326 = vunpack.c.h.b16 %v1232
    %v1327 = vunpack.c.l.b16 %v1233
    %v1328 = vunpack.c.h.b16 %v1233
    %v1329 = vunpack.c.l.b16 %v1234
    %v1330 = vunpack.c.h.b16 %v1234
    %v1331 = vunpack.c.l.b16 %v1235
    %v1332 = vunpack.c.h.b16 %v1235
    %v1333 = vunpack.c.l.b16 %v1236
    %v1334 = vunpack.c.h.b16 %v1236
    %v1335 = vunpack.c.l.b16 %v1237
    %v1336 = vunpack.c.h.b16 %v1237
    %v1337 = vunpack.c.l.b16 %v1238
    %v1338 = vunpack.c.h.b16 %v1238
    %v1339 = vunpack.c.l.b16 %v1239
    %v1340 = vunpack.c.h.b16 %v1239
    %v1341 = vunpack.c.l.b16 %v1240
    %v1342 = vunpack.c.h.b16 %v1240
    %v1343 = vunpack.c.l.b16 %v1241
    %v1344 = vunpack.c.h.b16 %v1241
    %v1345 = vunpack.c.l.b16 %v1242
    %v1346 = vunpack.c.h.b16 %v1242
    %v1347 = vunpack.c.l.b16 %v1243
    %v1348 = vunpack.c.h.b16 %v1243
    %v1349 = vunpack.c.l.b16 %v1244
    %v1350 = vunpack.c.h.b16 %v1244
    %v1351 = vunpack.c.l.b16 %v1245
    %v1352 = vunpack.c.h.b16 %v1245
    %v1353 = vunpack.c.l.b16 %v1246
    %v1354 = vunpack.c.h.b16 %v1246
    %v1355 = vunpack.c.l.b16 %v1247
    %v1356 = vunpack.c.h.b16 %v1247
    %v1357 = vunpack.c.l.b16 %v1248
    %v1358 = vunpack.c.h.b16 %v1248
    %v1359 = vunpack.c.l.b16 %v1249
    %v1360 = vunpack.c.h.b16 %v1249
    %v1361 = vunpack.c.l.b16 %v1250
    %v1362 = vunpack.c.h.b16 %v1250
    %v1363 = vpack.c.b16 %v1301, %v1299
    %v1364 = vpack.c.b16 %v1302, %v1300
    %v1365 = vpack.c.b16 %v1305, %v1303
    %v1366 = vpack.c.b16 %v1306, %v1304
    %v1367 = vpack.c.b16 %v1309, %v1307
    %v1368 = vpack.c.b16 %v1310, %v1308
    %v1369 = vpack.c.b16 %v1313, %v1311
    %v1370 = vpack.c.b16 %v1314, %v1312
    %v1371 = vpack.c.b16 %v1317, %v1315
    %v1372 = vpack.c.b16 %v1318, %v1316
    %v1373 = vpack.c.b16 %v1321, %v1319
    %v1374 = vpack.c.b16 %v1322, %v1320
    %v1375 = vpack.c.b16 %v1325, %v1323
    %v1376 = vpack.c.b16 %v1326, %v1324
    %v1377 = vpack.c.b16 %v1329, %v1327
    %v1378 = vpack.c.b16 %v1330, %v1328
    %v1379 = vpack.c.b16 %v1333, %v1331
    %v1380 = vpack.c.b16 %v1334, %v1332
    %v1381 = vpack.c.b16 %v1337, %v1335
    %v1382 = vpack.c.b16 %v1338, %v1336
    %v1383 = vpack.c.b16 %v1341, %v1339
    %v1384 = vpack.c.b16 %v1342, %v1340
    %v1385 = vpack.c.b16 %v1345, %v1343
    %v1386 = vpack.c.b16 %v1346, %v1344
    %v1387 = vpack.c.b16 %v1349, %v1347
    %v1388 = vpack.c.b16 %v1350, %v1348
    %v1389 = vpack.c.b16 %v1353, %v1351
    %v1390 = vpack.c.b16 %v1354, %v1352
    %v1391 = vpack.c.b16 %v1357, %v1355
    %v1392 = vpack.c.b16 %v1358, %v1356
    %v1393 = vpack.c.b16 %v1361, %v1359
    %v1394 = vpack.c.b16 %v1362, %v1360
    %1427 = vmatprep.subr.bf16.mxu0 %v1364
    %1428 = vmatpush1.bf16.msra.mxu0 %v1363
    %1429 = vmatprep.subr.bf16.mxu0 %v1366
    %1430 = vmatpush1.bf16.msra.mxu0 %v1365
    %1431 = vmatprep.subr.bf16.mxu0 %v1368
    %1432 = vmatpush1.bf16.msra.mxu0 %v1367
    %1433 = vmatprep.subr.bf16.mxu0 %v1370
    %1434 = vmatpush1.bf16.msra.mxu0 %v1369
    %1435 = vmatprep.subr.bf16.mxu0 %v1372
    %1436 = vmatpush1.bf16.msra.mxu0 %v1371
    %1437 = vmatprep.subr.bf16.mxu0 %v1374
    %1438 = vmatpush1.bf16.msra.mxu0 %v1373
    %1439 = vmatprep.subr.bf16.mxu0 %v1376
    %1440 = vmatpush1.bf16.msra.mxu0 %v1375
    %1441 = vmatprep.subr.bf16.mxu0 %v1378
    %1442 = vmatpush1.bf16.msra.mxu0 %v1377
    %1443 = vmatprep.subr.bf16.mxu0 %v1380
    %1444 = vmatpush1.bf16.msra.mxu0 %v1379
    %1445 = vmatprep.subr.bf16.mxu0 %v1382
    %1446 = vmatpush1.bf16.msra.mxu0 %v1381
    %1447 = vmatprep.subr.bf16.mxu0 %v1384
    %1448 = vmatpush1.bf16.msra.mxu0 %v1383
    %1449 = vmatprep.subr.bf16.mxu0 %v1386
    %1450 = vmatpush1.bf16.msra.mxu0 %v1385
    %1451 = vmatprep.subr.bf16.mxu0 %v1388
    %1452 = vmatpush1.bf16.msra.mxu0 %v1387
    %1453 = vmatprep.subr.bf16.mxu0 %v1390
    %1454 = vmatpush1.bf16.msra.mxu0 %v1389
    %1455 = vmatprep.subr.bf16.mxu0 %v1392
    %1456 = vmatpush1.bf16.msra.mxu0 %v1391
    %1457 = vmatprep.subr.bf16.mxu0 %v1394
    %1458 = vmatpush1.bf16.msra.mxu0 %v1393
    %1459 = vmatprep.mubr.bf16.mxu0 %v1260
    %1460 = vmatmul.mubr.bf16.gmra.mrb[0].mxu0 %v1259
    %v1461 = vpop.f32.mrb[0].mxu0
    %v1462 = vadd.f32 0.0, %v1461
    %v1463 = vpop.f32.mrb[0].mxu0
    %v1464 = vadd.f32 0.0, %v1463
    %v1465 = vpop.f32.mrb[0].mxu0
    %v1466 = vadd.f32 0.0, %v1465
    %v1467 = vpop.f32.mrb[0].mxu0
    %v1468 = vadd.f32 0.0, %v1467
    %1469 = vmatprep.mubr.bf16.mxu0 %v1262
    %1470 = vmatmul.mubr.bf16.gmra.mrb[0].mxu0 %v1261
    %v1471 = vpop.f32.mrb[0].mxu0
    %v1472 = vadd.f32 0.0, %v1471
    %v1473 = vpop.f32.mrb[0].mxu0
    %v1474 = vadd.f32 0.0, %v1473
    %v1475 = vpop.f32.mrb[0].mxu0
    %v1476 = vadd.f32 0.0, %v1475
    %v1477 = vpop.f32.mrb[0].mxu0
    %v1478 = vadd.f32 0.0, %v1477
    %1479 = vdwg.mxu0
    %v1480 = vadd.f32 %v1146, %v1462
    %v1481 = vadd.f32 %v1148, %v1464
    %v1482 = vadd.f32 %v1150, %v1466
    %v1483 = vadd.f32 %v1152, %v1468
    %v1484 = vadd.f32 %v1156, %v1472
    %v1485 = vadd.f32 %v1158, %v1474
    %v1486 = vadd.f32 %v1160, %v1476
    %v1487 = vadd.f32 %v1162, %v1478
    %v1488 = vld [vmem:[%s4] sm:$0x3]
    %v1490 = vlaneseq
    %v1491 = vshrl.u32 %v1490, 7
    %v1492 = vsub.s32 0, %v1491
    %v1493 = vrot.slane %v1488, %v1492
    %v1494 = vlaneseq
    %v1495 = vshrl.u32 %v1494, 7
    %v1496 = vsub.s32 1, %v1495
    %v1497 = vrot.slane %v1488, %v1496
    %v1500 = vadd.f32 %v1480, %v1493
    %v1501 = vadd.f32 %v1481, %v1497
    %v1502 = vadd.f32 %v1482, %v1493
    %v1503 = vadd.f32 %v1483, %v1497
    %v1504 = vadd.f32 %v1484, %v1493
    %v1505 = vadd.f32 %v1485, %v1497
    %v1506 = vadd.f32 %v1486, %v1493
    %v1507 = vadd.f32 %v1487, %v1497
    %v1508 = vmax.f32 %v1500, 0.0
    %v1509 = vmax.f32 %v1501, 0.0
    %v1510 = vmax.f32 %v1502, 0.0
    %v1511 = vmax.f32 %v1503, 0.0
    %v1512 = vmax.f32 %v1504, 0.0
    %v1513 = vmax.f32 %v1505, 0.0
    %v1514 = vmax.f32 %v1506, 0.0
    %v1515 = vmax.f32 %v1507, 0.0
    %v1516 = vpack.c.bf16 %v1510, %v1508
    %v1517 = vpack.c.bf16 %v1511, %v1509
    %v1518 = vpack.c.bf16 %v1514, %v1512
    %v1519 = vpack.c.bf16 %v1515, %v1513
    %v1520 = vld [vmem:[#allocation8] sm:$0xf]
    %v1521 = vld [vmem:[#allocation8 + $0x4] sm:$0xf]
    %v1522 = vld [vmem:[#allocation8 + $0x8] sm:$0xf]
    %v1523 = vld [vmem:[#allocation8 + $0xc] sm:$0xf]
    %v1524 = vld [vmem:[#allocation8 + $0x10] sm:$0xf]
    %v1525 = vld [vmem:[#allocation8 + $0x14] sm:$0xf]
    %v1526 = vld [vmem:[#allocation8 + $0x18] sm:$0xf]
    %v1527 = vld [vmem:[#allocation8 + $0x1c] sm:$0xf]
    %v1528 = vld [vmem:[#allocation8 + $0x20] sm:$0xf]
    %v1529 = vld [vmem:[#allocation8 + $0x24] sm:$0xf]
    %v1530 = vld [vmem:[#allocation8 + $0x28] sm:$0xf]
    %v1531 = vld [vmem:[#allocation8 + $0x2c] sm:$0xf]
    %v1532 = vld [vmem:[#allocation8 + $0x30] sm:$0xf]
    %v1533 = vld [vmem:[#allocation8 + $0x34] sm:$0xf]
    %v1534 = vld [vmem:[#allocation8 + $0x38] sm:$0xf]
    %v1535 = vld [vmem:[#allocation8 + $0x3c] sm:$0xf]
    %v1536 = vld [vmem:[#allocation8 + $0x40] sm:$0xf]
    %v1537 = vld [vmem:[#allocation8 + $0x44] sm:$0xf]
    %v1538 = vld [vmem:[#allocation8 + $0x48] sm:$0xf]
    %v1539 = vld [vmem:[#allocation8 + $0x4c] sm:$0xf]
    %v1540 = vld [vmem:[#allocation8 + $0x50] sm:$0xf]
    %v1541 = vld [vmem:[#allocation8 + $0x54] sm:$0xf]
    %v1542 = vld [vmem:[#allocation8 + $0x58] sm:$0xf]
    %v1543 = vld [vmem:[#allocation8 + $0x5c] sm:$0xf]
    %v1544 = vld [vmem:[#allocation8 + $0x60] sm:$0xf]
    %v1545 = vld [vmem:[#allocation8 + $0x64] sm:$0xf]
    %v1546 = vld [vmem:[#allocation8 + $0x68] sm:$0xf]
    %v1547 = vld [vmem:[#allocation8 + $0x6c] sm:$0xf]
    %v1548 = vld [vmem:[#allocation8 + $0x70] sm:$0xf]
    %v1549 = vld [vmem:[#allocation8 + $0x74] sm:$0xf]
    %v1550 = vld [vmem:[#allocation8 + $0x78] sm:$0xf]
    %v1551 = vld [vmem:[#allocation8 + $0x7c] sm:$0xf]
    %v1552 = vld [vmem:[%s6] sm:$0x1]
    %v1554 = vlaneseq
    %v1555 = vshrl.u32 %v1554, 7
    %v1556 = vsub.s32 0, %v1555
    %v1557 = vrot.slane %v1552, %v1556
    %v1591 = vunpack.c.l.b16 %v1520
    %v1592 = vunpack.c.l.b16 %v1521
    %v1593 = vunpack.c.l.b16 %v1522
    %v1594 = vunpack.c.l.b16 %v1523
    %v1595 = vunpack.c.l.b16 %v1524
    %v1596 = vunpack.c.l.b16 %v1525
    %v1597 = vunpack.c.l.b16 %v1526
    %v1598 = vunpack.c.l.b16 %v1527
    %v1599 = vunpack.c.l.b16 %v1528
    %v1600 = vunpack.c.l.b16 %v1529
    %v1601 = vunpack.c.l.b16 %v1530
    %v1602 = vunpack.c.l.b16 %v1531
    %v1603 = vunpack.c.l.b16 %v1532
    %v1604 = vunpack.c.l.b16 %v1533
    %v1605 = vunpack.c.l.b16 %v1534
    %v1606 = vunpack.c.l.b16 %v1535
    %v1607 = vunpack.c.l.b16 %v1536
    %v1608 = vunpack.c.l.b16 %v1537
    %v1609 = vunpack.c.l.b16 %v1538
    %v1610 = vunpack.c.l.b16 %v1539
    %v1611 = vunpack.c.l.b16 %v1540
    %v1612 = vunpack.c.l.b16 %v1541
    %v1613 = vunpack.c.l.b16 %v1542
    %v1614 = vunpack.c.l.b16 %v1543
    %v1615 = vunpack.c.l.b16 %v1544
    %v1616 = vunpack.c.l.b16 %v1545
    %v1617 = vunpack.c.l.b16 %v1546
    %v1618 = vunpack.c.l.b16 %v1547
    %v1619 = vunpack.c.l.b16 %v1548
    %v1620 = vunpack.c.l.b16 %v1549
    %v1621 = vunpack.c.l.b16 %v1550
    %v1622 = vunpack.c.l.b16 %v1551
    %v1623 = vpack.c.b16 %v1592, %v1591
    %v1624 = vpack.c.b16 %v1594, %v1593
    %v1625 = vpack.c.b16 %v1596, %v1595
    %v1626 = vpack.c.b16 %v1598, %v1597
    %v1627 = vpack.c.b16 %v1600, %v1599
    %v1628 = vpack.c.b16 %v1602, %v1601
    %v1629 = vpack.c.b16 %v1604, %v1603
    %v1630 = vpack.c.b16 %v1606, %v1605
    %v1631 = vpack.c.b16 %v1608, %v1607
    %v1632 = vpack.c.b16 %v1610, %v1609
    %v1633 = vpack.c.b16 %v1612, %v1611
    %v1634 = vpack.c.b16 %v1614, %v1613
    %v1635 = vpack.c.b16 %v1616, %v1615
    %v1636 = vpack.c.b16 %v1618, %v1617
    %v1637 = vpack.c.b16 %v1620, %v1619
    %v1638 = vpack.c.b16 %v1622, %v1621
    %1655 = vmatprep.subr.bf16.mxu0 0
    %1656 = vmatpush1.bf16.msra.mxu0 %v1623
    %1657 = vmatprep.subr.bf16.mxu0 0
    %1658 = vmatpush1.bf16.msra.mxu0 %v1624
    %1659 = vmatprep.subr.bf16.mxu0 0
    %1660 = vmatpush1.bf16.msra.mxu0 %v1625
    %1661 = vmatprep.subr.bf16.mxu0 0
    %1662 = vmatpush1.bf16.msra.mxu0 %v1626
    %1663 = vmatprep.subr.bf16.mxu0 0
    %1664 = vmatpush1.bf16.msra.mxu0 %v1627
    %1665 = vmatprep.subr.bf16.mxu0 0
    %1666 = vmatpush1.bf16.msra.mxu0 %v1628
    %1667 = vmatprep.subr.bf16.mxu0 0
    %1668 = vmatpush1.bf16.msra.mxu0 %v1629
    %1669 = vmatprep.subr.bf16.mxu0 0
    %1670 = vmatpush1.bf16.msra.mxu0 %v1630
    %1671 = vmatprep.subr.bf16.mxu0 0
    %1672 = vmatpush1.bf16.msra.mxu0 %v1631
    %1673 = vmatprep.subr.bf16.mxu0 0
    %1674 = vmatpush1.bf16.msra.mxu0 %v1632
    %1675 = vmatprep.subr.bf16.mxu0 0
    %1676 = vmatpush1.bf16.msra.mxu0 %v1633
    %1677 = vmatprep.subr.bf16.mxu0 0
    %1678 = vmatpush1.bf16.msra.mxu0 %v1634
    %1679 = vmatprep.subr.bf16.mxu0 0
    %1680 = vmatpush1.bf16.msra.mxu0 %v1635
    %1681 = vmatprep.subr.bf16.mxu0 0
    %1682 = vmatpush1.bf16.msra.mxu0 %v1636
    %1683 = vmatprep.subr.bf16.mxu0 0
    %1684 = vmatpush1.bf16.msra.mxu0 %v1637
    %1685 = vmatprep.subr.bf16.mxu0 0
    %1686 = vmatpush1.bf16.msra.mxu0 %v1638
    %1687 = vmatprep.mubr.bf16.mxu0 %v1517
    %1688 = vmatmul.mubr.bf16.gmra.mrb[0].mxu0 %v1516
    %v1689 = vpop.f32.mrb[0].mxu0
    %v1690 = vadd.f32 %v1557, %v1689
    %v1691 = vpop.f32.mrb[0].mxu0
    %v1692 = vpop.f32.mrb[0].mxu0
    %v1693 = vadd.f32 %v1557, %v1692
    %v1694 = vpop.f32.mrb[0].mxu0
    %1695 = vmatprep.mubr.bf16.mxu0 %v1519
    %1696 = vmatmul.mubr.bf16.gmra.mrb[0].mxu0 %v1518
    %v1697 = vpop.f32.mrb[0].mxu0
    %v1698 = vadd.f32 %v1557, %v1697
    %v1699 = vpop.f32.mrb[0].mxu0
    %v1700 = vpop.f32.mrb[0].mxu0
    %v1701 = vadd.f32 %v1557, %v1700
    %v1702 = vpop.f32.mrb[0].mxu0
    %1703 = vdwg.mxu0
    %1704 = vst [vmem:[#allocation9] sm:$0xff] %v1690
    %1705 = vst [vmem:[#allocation9 + $0x8] sm:$0xff] %v1693
    %1706 = vst [vmem:[#allocation9 + $0x10] sm:$0xff] %v1698
    %1707 = vst [vmem:[#allocation9 + $0x18] sm:$0xff] %v1701
    // Predicated region
    $region42: #{tpu_custom_call.1} parent=1 // pred_check
      _
    $region43: #{tpu_custom_call.1} parent=1 // pred_check_branch
      %1709 = sbr.rel (0) target = $region45
    $region44: #{tpu_custom_call.1} parent=1 // pred_region
      %s1711 = ssub.s32 512, 512
      %1712 = vsyncadd [#allocation5], %s1711
      %s1713 = sshll.u32 [#allocation9], 4
      %s1714 = int_to_ptr.vmem [resolvable:$true] %s1713
      %1719 = dma.vmem_to_hbm [thread:$0]  %s1714, 512, %s7, [#allocation5], 128, 128, 8
    $region45: #{tpu_custom_call.1} parent=1 // pred_fallthru
      _
    // Predicated region
    $region46: #{tpu_custom_call.1} parent=1 // pred_check
      _
    $region47: #{tpu_custom_call.1} parent=1 // pred_check_branch
      %1721 = sbr.rel (0) target = $region49
    $region48: #{tpu_custom_call.1} parent=1 // pred_region
      %1722 = dma.done [#allocation5], 512
    $region49: #{tpu_custom_call.1} parent=1 // pred_fallthru
      _
    %1723 = vsyncpa [#allocation4], 1
    %1724 = vsyncpa [#allocation7], 1
    %1725 = vsyncpa [#allocation5], 1

</llo_original>
